<compile_context>
chip_gen: v6e
topology: v6e:2x2x1
jax: 0.10.0
libtpu: 0.0.40
codegen_flags: <defaults>
</compile_context>

<pallas_src>
import functools

import jax
import jax.numpy as jnp
from jax.experimental import pallas as pl
from jax.experimental.pallas import tpu as pltpu


def _rrblock_kernel(scal_ref, bn_ref, x_ref, out_ref, h_ref, *,
                    n, cin, cout, shortcut):
    """RRBlock forward, collapsed (N*C, L) layout (lane = L, row = nn*C + c).

    scal_ref : SMEM f32 flat table: w1a | w1b | w2 | b1a (scalars).
    bn_ref   : VMEM f32 (6, n*cout, 1): g1, be1, g2, be2, g3, be3 (pre-tiled rows).
    x_ref    : VMEM f32 (n*cin,  L).
    out_ref  : VMEM f32 (n*cout, L).
    h_ref    : VMEM scratch f32 (n*cout, L), row-assembly target reused by all convs.
    """
    K = 3
    eps = 1e-5
    L = x_ref.shape[1]

    # Static offsets into the packed SMEM scalar table.
    off_w1a = 0
    off_w1b = off_w1a + cout * cin * K
    off_w2 = off_w1b + cout * cout * K
    off_b1a = off_w2 + cout * cin * K

    # Halo masks for the k=-1/+1 taps, built once and shared by all three convs.
    lane = jax.lax.broadcasted_iota(jnp.int32, (1, L), 1)
    not_first = lane > 0
    not_last = lane < (L - 1)

    inv_cnt = 1.0 / float(n * L)

    def conv(src, c_in, w_off, b_off=None):
        """'same' conv (K=3, stride 1, pad 1) as scalar(SMEM) x vector FMAs.

        src: (n*c_in, L) value, rows r = nn*c_in + ci.  Taps are lane rolls
        (XLU) with halo masking; output rows are assembled in the h_ref scratch.
        """
        tap_prev = jnp.where(not_first, pltpu.roll(src, 1, axis=1), 0.0)
        tap_next = jnp.where(not_last, pltpu.roll(src, L - 1, axis=1), 0.0)
        taps = (tap_prev, src, tap_next)
        for nn in range(n):                       # static unrolled loops
            for co in range(cout):
                acc = None
                for k in range(K):
                    t = taps[k]
                    for ci in range(c_in):
                        w = scal_ref[w_off + (co * c_in + ci) * K + k]
                        term = w * t[nn * c_in + ci:nn * c_in + ci + 1, :]
                        acc = term if acc is None else acc + term
                if b_off is not None:
                    acc = acc + scal_ref[b_off + co]
                h_ref[pl.ds(nn * cout + co, 1), :] = acc
        return h_ref[...]

    def channel_fold(v):
        """(n*cout, 1) per-row values -> per-channel totals replicated to every
        row of that channel (rows congruent mod cout)."""
        out = v
        for j in range(1, n):
            out = out + pltpu.roll(v, j * cout, axis=0)
        return out

    def batchnorm(y, gamma_rows, beta_rows):
        """Training-mode BN (batch stats, biased variance, eps=1e-5)."""
        s = jnp.sum(y, axis=1, keepdims=True)          # (n*cout, 1)
        sq = jnp.sum(y * y, axis=1, keepdims=True)     # (n*cout, 1)
        mean = channel_fold(s) * inv_cnt
        ex2 = channel_fold(sq) * inv_cnt
        var = jnp.maximum(ex2 - mean * mean, 0.0)
        scale = gamma_rows * jax.lax.rsqrt(var + eps)
        shift = beta_rows - mean * scale
        return y * scale + shift

    x = x_ref[...]

    # ---- block1 ----
    h = conv(x, cin, off_w1a, b_off=off_b1a)           # Conv1 (+bias; ReLU follows)
    h = jnp.maximum(h, 0.0)                            # ReLU
    h = batchnorm(h, bn_ref[0], bn_ref[1])             # BN1
    h = conv(h, cout, off_w1b)                         # Conv2 (bias cancels in BN)
    h = batchnorm(h, bn_ref[2], bn_ref[3])             # BN2

    if shortcut:
        out = x + h
    else:
        h2 = conv(x, cin, off_w2)                      # block2 conv (bias cancels)
        h2 = batchnorm(h2, bn_ref[4], bn_ref[5])       # block2 BN
        out = h + h2

    out_ref[...] = out.astype(out_ref.dtype)


def rrblock_pallas(x_ncl, params, *, shortcut: bool = True, stride: int = 1):
    """Wrapper. x_ncl: (N, Cin, L) like PyTorch; returns (N, Cout, L)."""
    # TODO(synk): std > 1 (strided first conv) not implemented.
    assert stride == 1, "only std=1 supported"
    N, Cin, L = x_ncl.shape
    Cout, _, K = params["w1a"].shape
    assert K == 3, "only size=3 (pad=1) supported"
    if shortcut:
        assert Cin == Cout, "shortcut residual requires nin == nout"

    f32 = jnp.float32
    x2 = x_ncl.reshape(N * Cin, L).astype(f32)

    # Conv weights + conv1a bias as one flat SMEM scalar table.  b1b / b2 are
    # intentionally dropped: a per-channel constant added right before a
    # training-mode BatchNorm cancels exactly.
    scal = jnp.concatenate([
        params["w1a"].reshape(-1).astype(f32),
        params["w1b"].reshape(-1).astype(f32),
        params["w2"].reshape(-1).astype(f32),
        params["b1a"].reshape(-1).astype(f32),
    ])

    def rows(v):   # per-channel (C,) -> per-row (N*C, 1) with row r = nn*C + c
        return jnp.tile(v.astype(f32), (N,))[:, None]

    bn = jnp.stack([rows(params[k])
                    for k in ("g1", "be1", "g2", "be2", "g3", "be3")], axis=0)

    kernel = functools.partial(_rrblock_kernel, n=N, cin=Cin, cout=Cout,
                               shortcut=shortcut)

    out2 = pl.pallas_call(
        kernel,
        out_shape=jax.ShapeDtypeStruct((N * Cout, L), f32),
        in_specs=[
            pl.BlockSpec(memory_space=pltpu.MemorySpace.SMEM),   # scalar weights/bias
            pl.BlockSpec(memory_space=pltpu.MemorySpace.VMEM),   # BN row params
            pl.BlockSpec(memory_space=pltpu.MemorySpace.VMEM),   # activations
        ],
        out_specs=pl.BlockSpec(memory_space=pltpu.MemorySpace.VMEM),
        scratch_shapes=[pltpu.VMEM((N * Cout, L), f32)],
    )(scal, bn, x2)
    return out2.reshape(N, Cout, L)


# ----------------------- pure-JAX reference (for checking) -----------------------
def _conv1d_ref(x, w, b):
    out = jax.lax.conv_general_dilated(
        x, w, window_strides=(1,), padding=[(1, 1)],
        dimension_numbers=("NCH", "OIH", "NCH"),
        precision=jax.lax.Precision.HIGHEST)
    return out + b[None, :, None]


def _bn_ref(y, g, be, eps=1e-5):
    mean = jnp.mean(y, axis=(0, 2), keepdims=True)
    var = jnp.mean((y - mean) ** 2, axis=(0, 2), keepdims=True)
    yn = (y - mean) * jax.lax.rsqrt(var + eps)
    return g[None, :, None] * yn + be[None, :, None]


def rrblock_ref(x, p, *, shortcut=True):
    h = _conv1d_ref(x, p["w1a"], p["b1a"])
    h = jnp.maximum(h, 0.0)
    h = _bn_ref(h, p["g1"], p["be1"])
    h = _conv1d_ref(h, p["w1b"], p["b1b"])
    h = _bn_ref(h, p["g2"], p["be2"])
    if shortcut:
        return x + h
    h2 = _bn_ref(_conv1d_ref(x, p["w2"], p["b2"]), p["g3"], p["be3"])
    return h + h2


# --------------------------------------- main ---------------------------------------
if __name__ == "__main__":
    # RRBlock(nin=4, nout=4, size=3, std=1); input (N=2, C=4, L=128)
    # L=128 keeps the lane axis fully dense; N*C=8 fills the sublane axis.
    N, C, L, K = 2, 4, 128, 3
    key = jax.random.PRNGKey(0)
    keys = jax.random.split(key, 16)

    def rnd(i, shape, scale):
        return scale * jax.random.normal(keys[i], shape, jnp.float32)

    params = dict(
        w1a=rnd(0, (C, C, K), 0.3), b1a=rnd(1, (C,), 0.1),
        g1=1.0 + rnd(2, (C,), 0.1), be1=rnd(3, (C,), 0.1),
        w1b=rnd(4, (C, C, K), 0.3), b1b=rnd(5, (C,), 0.1),
        g2=1.0 + rnd(6, (C,), 0.1), be2=rnd(7, (C,), 0.1),
        w2=rnd(8, (C, C, K), 0.3),  b2=rnd(9, (C,), 0.1),
        g3=1.0 + rnd(10, (C,), 0.1), be3=rnd(11, (C,), 0.1),
    )
    x = jax.random.normal(keys[12], (N, C, L), jnp.float32)

    for sc in (True, False):
        out = jax.block_until_ready(rrblock_pallas(x, params, shortcut=sc))
        ref = rrblock_ref(x, params, shortcut=sc)
        assert out.shape == (N, C, L), out.shape
        max_err = float(jnp.max(jnp.abs(out - ref)))
        assert max_err < 1e-3, f"shortcut={sc}: max abs err {max_err}"

    print("KERNEL_OK")
</pallas_src>

<mosaic_0001>
module attributes {stable_mosaic.version = 11 : i64} {
  func.func @_rrblock_kernel(%arg0: memref<148xf32, #tpu.memory_space<smem>>, %arg1: memref<6x8x1xf32, #tpu.memory_space<vmem>>, %arg2: memref<8x128xf32, #tpu.memory_space<vmem>>, %arg3: memref<8x128xf32, #tpu.memory_space<vmem>>, %arg4: memref<8x128xf32, #tpu.memory_space<vmem>>) attributes {dimension_semantics = [], scalar_prefetch = 0 : i64, scratch_operands = 1 : i64, tpu.core_type = #tpu.core_type<tc>} {
    %0 = tpu.iota {dimensions = array<i32: 1>} : vector<1x128xi32>
    %c0_i32 = arith.constant 0 : i32
    %1 = vector.broadcast %c0_i32 : i32 to vector<1x128xi32>
    %2 = arith.cmpi sgt, %0, %1 : vector<1x128xi32>
    %c127_i32 = arith.constant 127 : i32
    %3 = vector.broadcast %c127_i32 : i32 to vector<1x128xi32>
    %4 = arith.cmpi slt, %0, %3 : vector<1x128xi32>
    %c0 = arith.constant 0 : index
    %c0_0 = arith.constant 0 : index
    %5 = vector.load %arg2[%c0, %c0_0] : memref<8x128xf32, #tpu.memory_space<vmem>>, vector<8x128xf32>
    %c1_i32 = arith.constant 1 : i32
    %6 = tpu.dynamic_rotate %5 by %c1_i32 dim 1 : vector<8x128xf32>, i32 -> vector<8x128xf32>
    %cst = arith.constant 0.000000e+00 : f32
    %7 = vector.shape_cast %2 : vector<1x128xi1> to vector<1x128xi1>
    %8 = vector.broadcast %7 : vector<1x128xi1> to vector<8x128xi1>
    %9 = vector.broadcast %cst : f32 to vector<8x128xf32>
    %10 = arith.select %8, %6, %9 : vector<8x128xi1>, vector<8x128xf32>
    %c127_i32_1 = arith.constant 127 : i32
    %11 = tpu.dynamic_rotate %5 by %c127_i32_1 dim 1 : vector<8x128xf32>, i32 -> vector<8x128xf32>
    %cst_2 = arith.constant 0.000000e+00 : f32
    %12 = vector.shape_cast %4 : vector<1x128xi1> to vector<1x128xi1>
    %13 = vector.broadcast %12 : vector<1x128xi1> to vector<8x128xi1>
    %14 = vector.broadcast %cst_2 : f32 to vector<8x128xf32>
    %15 = arith.select %13, %11, %14 : vector<8x128xi1>, vector<8x128xf32>
    %c0_3 = arith.constant 0 : index
    %16 = memref.load %arg0[%c0_3] : memref<148xf32, #tpu.memory_space<smem>>
    %17 = vector.extract_strided_slice %10 {offsets = [0, 0], sizes = [1, 128], strides = [1, 1]} : vector<8x128xf32> to vector<1x128xf32>
    %18 = vector.broadcast %16 : f32 to vector<1x128xf32>
    %19 = arith.mulf %18, %17 : vector<1x128xf32>
    %c3 = arith.constant 3 : index
    %20 = memref.load %arg0[%c3] : memref<148xf32, #tpu.memory_space<smem>>
    %21 = vector.extract_strided_slice %10 {offsets = [1, 0], sizes = [1, 128], strides = [1, 1]} : vector<8x128xf32> to vector<1x128xf32>
    %22 = vector.broadcast %20 : f32 to vector<1x128xf32>
    %23 = arith.mulf %22, %21 : vector<1x128xf32>
    %24 = arith.addf %19, %23 : vector<1x128xf32>
    %c6 = arith.constant 6 : index
    %25 = memref.load %arg0[%c6] : memref<148xf32, #tpu.memory_space<smem>>
    %26 = vector.extract_strided_slice %10 {offsets = [2, 0], sizes = [1, 128], strides = [1, 1]} : vector<8x128xf32> to vector<1x128xf32>
    %27 = vector.broadcast %25 : f32 to vector<1x128xf32>
    %28 = arith.mulf %27, %26 : vector<1x128xf32>
    %29 = arith.addf %24, %28 : vector<1x128xf32>
    %c9 = arith.constant 9 : index
    %30 = memref.load %arg0[%c9] : memref<148xf32, #tpu.memory_space<smem>>
    %31 = vector.extract_strided_slice %10 {offsets = [3, 0], sizes = [1, 128], strides = [1, 1]} : vector<8x128xf32> to vector<1x128xf32>
    %32 = vector.broadcast %30 : f32 to vector<1x128xf32>
    %33 = arith.mulf %32, %31 : vector<1x128xf32>
    %34 = arith.addf %29, %33 : vector<1x128xf32>
    %c1 = arith.constant 1 : index
    %35 = memref.load %arg0[%c1] : memref<148xf32, #tpu.memory_space<smem>>
    %36 = vector.extract_strided_slice %5 {offsets = [0, 0], sizes = [1, 128], strides = [1, 1]} : vector<8x128xf32> to vector<1x128xf32>
    %37 = vector.broadcast %35 : f32 to vector<1x128xf32>
    %38 = arith.mulf %37, %36 : vector<1x128xf32>
    %39 = arith.addf %34, %38 : vector<1x128xf32>
    %c4 = arith.constant 4 : index
    %40 = memref.load %arg0[%c4] : memref<148xf32, #tpu.memory_space<smem>>
    %41 = vector.extract_strided_slice %5 {offsets = [1, 0], sizes = [1, 128], strides = [1, 1]} : vector<8x128xf32> to vector<1x128xf32>
    %42 = vector.broadcast %40 : f32 to vector<1x128xf32>
    %43 = arith.mulf %42, %41 : vector<1x128xf32>
    %44 = arith.addf %39, %43 : vector<1x128xf32>
    %c7 = arith.constant 7 : index
    %45 = memref.load %arg0[%c7] : memref<148xf32, #tpu.memory_space<smem>>
    %46 = vector.extract_strided_slice %5 {offsets = [2, 0], sizes = [1, 128], strides = [1, 1]} : vector<8x128xf32> to vector<1x128xf32>
    %47 = vector.broadcast %45 : f32 to vector<1x128xf32>
    %48 = arith.mulf %47, %46 : vector<1x128xf32>
    %49 = arith.addf %44, %48 : vector<1x128xf32>
    %c10 = arith.constant 10 : index
    %50 = memref.load %arg0[%c10] : memref<148xf32, #tpu.memory_space<smem>>
    %51 = vector.extract_strided_slice %5 {offsets = [3, 0], sizes = [1, 128], strides = [1, 1]} : vector<8x128xf32> to vector<1x128xf32>
    %52 = vector.broadcast %50 : f32 to vector<1x128xf32>
    %53 = arith.mulf %52, %51 : vector<1x128xf32>
    %54 = arith.addf %49, %53 : vector<1x128xf32>
    %c2 = arith.constant 2 : index
    %55 = memref.load %arg0[%c2] : memref<148xf32, #tpu.memory_space<smem>>
    %56 = vector.extract_strided_slice %15 {offsets = [0, 0], sizes = [1, 128], strides = [1, 1]} : vector<8x128xf32> to vector<1x128xf32>
    %57 = vector.broadcast %55 : f32 to vector<1x128xf32>
    %58 = arith.mulf %57, %56 : vector<1x128xf32>
    %59 = arith.addf %54, %58 : vector<1x128xf32>
    %c5 = arith.constant 5 : index
    %60 = memref.load %arg0[%c5] : memref<148xf32, #tpu.memory_space<smem>>
    %61 = vector.extract_strided_slice %15 {offsets = [1, 0], sizes = [1, 128], strides = [1, 1]} : vector<8x128xf32> to vector<1x128xf32>
    %62 = vector.broadcast %60 : f32 to vector<1x128xf32>
    %63 = arith.mulf %62, %61 : vector<1x128xf32>
    %64 = arith.addf %59, %63 : vector<1x128xf32>
    %c8 = arith.constant 8 : index
    %65 = memref.load %arg0[%c8] : memref<148xf32, #tpu.memory_space<smem>>
    %66 = vector.extract_strided_slice %15 {offsets = [2, 0], sizes = [1, 128], strides = [1, 1]} : vector<8x128xf32> to vector<1x128xf32>
    %67 = vector.broadcast %65 : f32 to vector<1x128xf32>
    %68 = arith.mulf %67, %66 : vector<1x128xf32>
    %69 = arith.addf %64, %68 : vector<1x128xf32>
    %c11 = arith.constant 11 : index
    %70 = memref.load %arg0[%c11] : memref<148xf32, #tpu.memory_space<smem>>
    %71 = vector.extract_strided_slice %15 {offsets = [3, 0], sizes = [1, 128], strides = [1, 1]} : vector<8x128xf32> to vector<1x128xf32>
    %72 = vector.broadcast %70 : f32 to vector<1x128xf32>
    %73 = arith.mulf %72, %71 : vector<1x128xf32>
    %74 = arith.addf %69, %73 : vector<1x128xf32>
    %c144 = arith.constant 144 : index
    %75 = memref.load %arg0[%c144] : memref<148xf32, #tpu.memory_space<smem>>
    %76 = vector.broadcast %75 : f32 to vector<1x128xf32>
    %77 = arith.addf %74, %76 : vector<1x128xf32>
    %c0_4 = arith.constant 0 : index
    %c0_5 = arith.constant 0 : index
    %78 = vector.load %arg4[%c0_4, %c0_5] : memref<8x128xf32, #tpu.memory_space<vmem>>, vector<1x128xf32>
    tpu.vector_store %arg4[%c0_4, %c0_5], %77 {strides = array<i32>} : memref<8x128xf32, #tpu.memory_space<vmem>>, vector<1x128xf32>,
    %c12 = arith.constant 12 : index
    %79 = memref.load %arg0[%c12] : memref<148xf32, #tpu.memory_space<smem>>
    %80 = vector.extract_strided_slice %10 {offsets = [0, 0], sizes = [1, 128], strides = [1, 1]} : vector<8x128xf32> to vector<1x128xf32>
    %81 = vector.broadcast %79 : f32 to vector<1x128xf32>
    %82 = arith.mulf %81, %80 : vector<1x128xf32>
    %c15 = arith.constant 15 : index
    %83 = memref.load %arg0[%c15] : memref<148xf32, #tpu.memory_space<smem>>
    %84 = vector.extract_strided_slice %10 {offsets = [1, 0], sizes = [1, 128], strides = [1, 1]} : vector<8x128xf32> to vector<1x128xf32>
    %85 = vector.broadcast %83 : f32 to vector<1x128xf32>
    %86 = arith.mulf %85, %84 : vector<1x128xf32>
    %87 = arith.addf %82, %86 : vector<1x128xf32>
    %c18 = arith.constant 18 : index
    %88 = memref.load %arg0[%c18] : memref<148xf32, #tpu.memory_space<smem>>
    %89 = vector.extract_strided_slice %10 {offsets = [2, 0], sizes = [1, 128], strides = [1, 1]} : vector<8x128xf32> to vector<1x128xf32>
    %90 = vector.broadcast %88 : f32 to vector<1x128xf32>
    %91 = arith.mulf %90, %89 : vector<1x128xf32>
    %92 = arith.addf %87, %91 : vector<1x128xf32>
    %c21 = arith.constant 21 : index
    %93 = memref.load %arg0[%c21] : memref<148xf32, #tpu.memory_space<smem>>
    %94 = vector.extract_strided_slice %10 {offsets = [3, 0], sizes = [1, 128], strides = [1, 1]} : vector<8x128xf32> to vector<1x128xf32>
    %95 = vector.broadcast %93 : f32 to vector<1x128xf32>
    %96 = arith.mulf %95, %94 : vector<1x128xf32>
    %97 = arith.addf %92, %96 : vector<1x128xf32>
    %c13 = arith.constant 13 : index
    %98 = memref.load %arg0[%c13] : memref<148xf32, #tpu.memory_space<smem>>
    %99 = vector.extract_strided_slice %5 {offsets = [0, 0], sizes = [1, 128], strides = [1, 1]} : vector<8x128xf32> to vector<1x128xf32>
    %100 = vector.broadcast %98 : f32 to vector<1x128xf32>
    %101 = arith.mulf %100, %99 : vector<1x128xf32>
    %102 = arith.addf %97, %101 : vector<1x128xf32>
    %c16 = arith.constant 16 : index
    %103 = memref.load %arg0[%c16] : memref<148xf32, #tpu.memory_space<smem>>
    %104 = vector.extract_strided_slice %5 {offsets = [1, 0], sizes = [1, 128], strides = [1, 1]} : vector<8x128xf32> to vector<1x128xf32>
    %105 = vector.broadcast %103 : f32 to vector<1x128xf32>
    %106 = arith.mulf %105, %104 : vector<1x128xf32>
    %107 = arith.addf %102, %106 : vector<1x128xf32>
    %c19 = arith.constant 19 : index
    %108 = memref.load %arg0[%c19] : memref<148xf32, #tpu.memory_space<smem>>
    %109 = vector.extract_strided_slice %5 {offsets = [2, 0], sizes = [1, 128], strides = [1, 1]} : vector<8x128xf32> to vector<1x128xf32>
    %110 = vector.broadcast %108 : f32 to vector<1x128xf32>
    %111 = arith.mulf %110, %109 : vector<1x128xf32>
    %112 = arith.addf %107, %111 : vector<1x128xf32>
    %c22 = arith.constant 22 : index
    %113 = memref.load %arg0[%c22] : memref<148xf32, #tpu.memory_space<smem>>
    %114 = vector.extract_strided_slice %5 {offsets = [3, 0], sizes = [1, 128], strides = [1, 1]} : vector<8x128xf32> to vector<1x128xf32>
    %115 = vector.broadcast %113 : f32 to vector<1x128xf32>
    %116 = arith.mulf %115, %114 : vector<1x128xf32>
    %117 = arith.addf %112, %116 : vector<1x128xf32>
    %c14 = arith.constant 14 : index
    %118 = memref.load %arg0[%c14] : memref<148xf32, #tpu.memory_space<smem>>
    %119 = vector.extract_strided_slice %15 {offsets = [0, 0], sizes = [1, 128], strides = [1, 1]} : vector<8x128xf32> to vector<1x128xf32>
    %120 = vector.broadcast %118 : f32 to vector<1x128xf32>
    %121 = arith.mulf %120, %119 : vector<1x128xf32>
    %122 = arith.addf %117, %121 : vector<1x128xf32>
    %c17 = arith.constant 17 : index
    %123 = memref.load %arg0[%c17] : memref<148xf32, #tpu.memory_space<smem>>
    %124 = vector.extract_strided_slice %15 {offsets = [1, 0], sizes = [1, 128], strides = [1, 1]} : vector<8x128xf32> to vector<1x128xf32>
    %125 = vector.broadcast %123 : f32 to vector<1x128xf32>
    %126 = arith.mulf %125, %124 : vector<1x128xf32>
    %127 = arith.addf %122, %126 : vector<1x128xf32>
    %c20 = arith.constant 20 : index
    %128 = memref.load %arg0[%c20] : memref<148xf32, #tpu.memory_space<smem>>
    %129 = vector.extract_strided_slice %15 {offsets = [2, 0], sizes = [1, 128], strides = [1, 1]} : vector<8x128xf32> to vector<1x128xf32>
    %130 = vector.broadcast %128 : f32 to vector<1x128xf32>
    %131 = arith.mulf %130, %129 : vector<1x128xf32>
    %132 = arith.addf %127, %131 : vector<1x128xf32>
    %c23 = arith.constant 23 : index
    %133 = memref.load %arg0[%c23] : memref<148xf32, #tpu.memory_space<smem>>
    %134 = vector.extract_strided_slice %15 {offsets = [3, 0], sizes = [1, 128], strides = [1, 1]} : vector<8x128xf32> to vector<1x128xf32>
    %135 = vector.broadcast %133 : f32 to vector<1x128xf32>
    %136 = arith.mulf %135, %134 : vector<1x128xf32>
    %137 = arith.addf %132, %136 : vector<1x128xf32>
    %c145 = arith.constant 145 : index
    %138 = memref.load %arg0[%c145] : memref<148xf32, #tpu.memory_space<smem>>
    %139 = vector.broadcast %138 : f32 to vector<1x128xf32>
    %140 = arith.addf %137, %139 : vector<1x128xf32>
    %c1_6 = arith.constant 1 : index
    %c0_7 = arith.constant 0 : index
    %141 = vector.load %arg4[%c1_6, %c0_7] : memref<8x128xf32, #tpu.memory_space<vmem>>, vector<1x128xf32>
    tpu.vector_store %arg4[%c1_6, %c0_7], %140 {strides = array<i32>} : memref<8x128xf32, #tpu.memory_space<vmem>>, vector<1x128xf32>,
    %c24 = arith.constant 24 : index
    %142 = memref.load %arg0[%c24] : memref<148xf32, #tpu.memory_space<smem>>
    %143 = vector.extract_strided_slice %10 {offsets = [0, 0], sizes = [1, 128], strides = [1, 1]} : vector<8x128xf32> to vector<1x128xf32>
    %144 = vector.broadcast %142 : f32 to vector<1x128xf32>
    %145 = arith.mulf %144, %143 : vector<1x128xf32>
    %c27 = arith.constant 27 : index
    %146 = memref.load %arg0[%c27] : memref<148xf32, #tpu.memory_space<smem>>
    %147 = vector.extract_strided_slice %10 {offsets = [1, 0], sizes = [1, 128], strides = [1, 1]} : vector<8x128xf32> to vector<1x128xf32>
    %148 = vector.broadcast %146 : f32 to vector<1x128xf32>
    %149 = arith.mulf %148, %147 : vector<1x128xf32>
    %150 = arith.addf %145, %149 : vector<1x128xf32>
    %c30 = arith.constant 30 : index
    %151 = memref.load %arg0[%c30] : memref<148xf32, #tpu.memory_space<smem>>
    %152 = vector.extract_strided_slice %10 {offsets = [2, 0], sizes = [1, 128], strides = [1, 1]} : vector<8x128xf32> to vector<1x128xf32>
    %153 = vector.broadcast %151 : f32 to vector<1x128xf32>
    %154 = arith.mulf %153, %152 : vector<1x128xf32>
    %155 = arith.addf %150, %154 : vector<1x128xf32>
    %c33 = arith.constant 33 : index
    %156 = memref.load %arg0[%c33] : memref<148xf32, #tpu.memory_space<smem>>
    %157 = vector.extract_strided_slice %10 {offsets = [3, 0], sizes = [1, 128], strides = [1, 1]} : vector<8x128xf32> to vector<1x128xf32>
    %158 = vector.broadcast %156 : f32 to vector<1x128xf32>
    %159 = arith.mulf %158, %157 : vector<1x128xf32>
    %160 = arith.addf %155, %159 : vector<1x128xf32>
    %c25 = arith.constant 25 : index
    %161 = memref.load %arg0[%c25] : memref<148xf32, #tpu.memory_space<smem>>
    %162 = vector.extract_strided_slice %5 {offsets = [0, 0], sizes = [1, 128], strides = [1, 1]} : vector<8x128xf32> to vector<1x128xf32>
    %163 = vector.broadcast %161 : f32 to vector<1x128xf32>
    %164 = arith.mulf %163, %162 : vector<1x128xf32>
    %165 = arith.addf %160, %164 : vector<1x128xf32>
    %c28 = arith.constant 28 : index
    %166 = memref.load %arg0[%c28] : memref<148xf32, #tpu.memory_space<smem>>
    %167 = vector.extract_strided_slice %5 {offsets = [1, 0], sizes = [1, 128], strides = [1, 1]} : vector<8x128xf32> to vector<1x128xf32>
    %168 = vector.broadcast %166 : f32 to vector<1x128xf32>
    %169 = arith.mulf %168, %167 : vector<1x128xf32>
    %170 = arith.addf %165, %169 : vector<1x128xf32>
    %c31 = arith.constant 31 : index
    %171 = memref.load %arg0[%c31] : memref<148xf32, #tpu.memory_space<smem>>
    %172 = vector.extract_strided_slice %5 {offsets = [2, 0], sizes = [1, 128], strides = [1, 1]} : vector<8x128xf32> to vector<1x128xf32>
    %173 = vector.broadcast %171 : f32 to vector<1x128xf32>
    %174 = arith.mulf %173, %172 : vector<1x128xf32>
    %175 = arith.addf %170, %174 : vector<1x128xf32>
    %c34 = arith.constant 34 : index
    %176 = memref.load %arg0[%c34] : memref<148xf32, #tpu.memory_space<smem>>
    %177 = vector.extract_strided_slice %5 {offsets = [3, 0], sizes = [1, 128], strides = [1, 1]} : vector<8x128xf32> to vector<1x128xf32>
    %178 = vector.broadcast %176 : f32 to vector<1x128xf32>
    %179 = arith.mulf %178, %177 : vector<1x128xf32>
    %180 = arith.addf %175, %179 : vector<1x128xf32>
    %c26 = arith.constant 26 : index
    %181 = memref.load %arg0[%c26] : memref<148xf32, #tpu.memory_space<smem>>
    %182 = vector.extract_strided_slice %15 {offsets = [0, 0], sizes = [1, 128], strides = [1, 1]} : vector<8x128xf32> to vector<1x128xf32>
    %183 = vector.broadcast %181 : f32 to vector<1x128xf32>
    %184 = arith.mulf %183, %182 : vector<1x128xf32>
    %185 = arith.addf %180, %184 : vector<1x128xf32>
    %c29 = arith.constant 29 : index
    %186 = memref.load %arg0[%c29] : memref<148xf32, #tpu.memory_space<smem>>
    %187 = vector.extract_strided_slice %15 {offsets = [1, 0], sizes = [1, 128], strides = [1, 1]} : vector<8x128xf32> to vector<1x128xf32>
    %188 = vector.broadcast %186 : f32 to vector<1x128xf32>
    %189 = arith.mulf %188, %187 : vector<1x128xf32>
    %190 = arith.addf %185, %189 : vector<1x128xf32>
    %c32 = arith.constant 32 : index
    %191 = memref.load %arg0[%c32] : memref<148xf32, #tpu.memory_space<smem>>
    %192 = vector.extract_strided_slice %15 {offsets = [2, 0], sizes = [1, 128], strides = [1, 1]} : vector<8x128xf32> to vector<1x128xf32>
    %193 = vector.broadcast %191 : f32 to vector<1x128xf32>
    %194 = arith.mulf %193, %192 : vector<1x128xf32>
    %195 = arith.addf %190, %194 : vector<1x128xf32>
    %c35 = arith.constant 35 : index
    %196 = memref.load %arg0[%c35] : memref<148xf32, #tpu.memory_space<smem>>
    %197 = vector.extract_strided_slice %15 {offsets = [3, 0], sizes = [1, 128], strides = [1, 1]} : vector<8x128xf32> to vector<1x128xf32>
    %198 = vector.broadcast %196 : f32 to vector<1x128xf32>
    %199 = arith.mulf %198, %197 : vector<1x128xf32>
    %200 = arith.addf %195, %199 : vector<1x128xf32>
    %c146 = arith.constant 146 : index
    %201 = memref.load %arg0[%c146] : memref<148xf32, #tpu.memory_space<smem>>
    %202 = vector.broadcast %201 : f32 to vector<1x128xf32>
    %203 = arith.addf %200, %202 : vector<1x128xf32>
    %c2_8 = arith.constant 2 : index
    %c0_9 = arith.constant 0 : index
    %204 = vector.load %arg4[%c2_8, %c0_9] : memref<8x128xf32, #tpu.memory_space<vmem>>, vector<1x128xf32>
    tpu.vector_store %arg4[%c2_8, %c0_9], %203 {strides = array<i32>} : memref<8x128xf32, #tpu.memory_space<vmem>>, vector<1x128xf32>,
    %c36 = arith.constant 36 : index
    %205 = memref.load %arg0[%c36] : memref<148xf32, #tpu.memory_space<smem>>
    %206 = vector.extract_strided_slice %10 {offsets = [0, 0], sizes = [1, 128], strides = [1, 1]} : vector<8x128xf32> to vector<1x128xf32>
    %207 = vector.broadcast %205 : f32 to vector<1x128xf32>
    %208 = arith.mulf %207, %206 : vector<1x128xf32>
    %c39 = arith.constant 39 : index
    %209 = memref.load %arg0[%c39] : memref<148xf32, #tpu.memory_space<smem>>
    %210 = vector.extract_strided_slice %10 {offsets = [1, 0], sizes = [1, 128], strides = [1, 1]} : vector<8x128xf32> to vector<1x128xf32>
    %211 = vector.broadcast %209 : f32 to vector<1x128xf32>
    %212 = arith.mulf %211, %210 : vector<1x128xf32>
    %213 = arith.addf %208, %212 : vector<1x128xf32>
    %c42 = arith.constant 42 : index
    %214 = memref.load %arg0[%c42] : memref<148xf32, #tpu.memory_space<smem>>
    %215 = vector.extract_strided_slice %10 {offsets = [2, 0], sizes = [1, 128], strides = [1, 1]} : vector<8x128xf32> to vector<1x128xf32>
    %216 = vector.broadcast %214 : f32 to vector<1x128xf32>
    %217 = arith.mulf %216, %215 : vector<1x128xf32>
    %218 = arith.addf %213, %217 : vector<1x128xf32>
    %c45 = arith.constant 45 : index
    %219 = memref.load %arg0[%c45] : memref<148xf32, #tpu.memory_space<smem>>
    %220 = vector.extract_strided_slice %10 {offsets = [3, 0], sizes = [1, 128], strides = [1, 1]} : vector<8x128xf32> to vector<1x128xf32>
    %221 = vector.broadcast %219 : f32 to vector<1x128xf32>
    %222 = arith.mulf %221, %220 : vector<1x128xf32>
    %223 = arith.addf %218, %222 : vector<1x128xf32>
    %c37 = arith.constant 37 : index
    %224 = memref.load %arg0[%c37] : memref<148xf32, #tpu.memory_space<smem>>
    %225 = vector.extract_strided_slice %5 {offsets = [0, 0], sizes = [1, 128], strides = [1, 1]} : vector<8x128xf32> to vector<1x128xf32>
    %226 = vector.broadcast %224 : f32 to vector<1x128xf32>
    %227 = arith.mulf %226, %225 : vector<1x128xf32>
    %228 = arith.addf %223, %227 : vector<1x128xf32>
    %c40 = arith.constant 40 : index
    %229 = memref.load %arg0[%c40] : memref<148xf32, #tpu.memory_space<smem>>
    %230 = vector.extract_strided_slice %5 {offsets = [1, 0], sizes = [1, 128], strides = [1, 1]} : vector<8x128xf32> to vector<1x128xf32>
    %231 = vector.broadcast %229 : f32 to vector<1x128xf32>
    %232 = arith.mulf %231, %230 : vector<1x128xf32>
    %233 = arith.addf %228, %232 : vector<1x128xf32>
    %c43 = arith.constant 43 : index
    %234 = memref.load %arg0[%c43] : memref<148xf32, #tpu.memory_space<smem>>
    %235 = vector.extract_strided_slice %5 {offsets = [2, 0], sizes = [1, 128], strides = [1, 1]} : vector<8x128xf32> to vector<1x128xf32>
    %236 = vector.broadcast %234 : f32 to vector<1x128xf32>
    %237 = arith.mulf %236, %235 : vector<1x128xf32>
    %238 = arith.addf %233, %237 : vector<1x128xf32>
    %c46 = arith.constant 46 : index
    %239 = memref.load %arg0[%c46] : memref<148xf32, #tpu.memory_space<smem>>
    %240 = vector.extract_strided_slice %5 {offsets = [3, 0], sizes = [1, 128], strides = [1, 1]} : vector<8x128xf32> to vector<1x128xf32>
    %241 = vector.broadcast %239 : f32 to vector<1x128xf32>
    %242 = arith.mulf %241, %240 : vector<1x128xf32>
    %243 = arith.addf %238, %242 : vector<1x128xf32>
    %c38 = arith.constant 38 : index
    %244 = memref.load %arg0[%c38] : memref<148xf32, #tpu.memory_space<smem>>
    %245 = vector.extract_strided_slice %15 {offsets = [0, 0], sizes = [1, 128], strides = [1, 1]} : vector<8x128xf32> to vector<1x128xf32>
    %246 = vector.broadcast %244 : f32 to vector<1x128xf32>
    %247 = arith.mulf %246, %245 : vector<1x128xf32>
    %248 = arith.addf %243, %247 : vector<1x128xf32>
    %c41 = arith.constant 41 : index
    %249 = memref.load %arg0[%c41] : memref<148xf32, #tpu.memory_space<smem>>
    %250 = vector.extract_strided_slice %15 {offsets = [1, 0], sizes = [1, 128], strides = [1, 1]} : vector<8x128xf32> to vector<1x128xf32>
    %251 = vector.broadcast %249 : f32 to vector<1x128xf32>
    %252 = arith.mulf %251, %250 : vector<1x128xf32>
    %253 = arith.addf %248, %252 : vector<1x128xf32>
    %c44 = arith.constant 44 : index
    %254 = memref.load %arg0[%c44] : memref<148xf32, #tpu.memory_space<smem>>
    %255 = vector.extract_strided_slice %15 {offsets = [2, 0], sizes = [1, 128], strides = [1, 1]} : vector<8x128xf32> to vector<1x128xf32>
    %256 = vector.broadcast %254 : f32 to vector<1x128xf32>
    %257 = arith.mulf %256, %255 : vector<1x128xf32>
    %258 = arith.addf %253, %257 : vector<1x128xf32>
    %c47 = arith.constant 47 : index
    %259 = memref.load %arg0[%c47] : memref<148xf32, #tpu.memory_space<smem>>
    %260 = vector.extract_strided_slice %15 {offsets = [3, 0], sizes = [1, 128], strides = [1, 1]} : vector<8x128xf32> to vector<1x128xf32>
    %261 = vector.broadcast %259 : f32 to vector<1x128xf32>
    %262 = arith.mulf %261, %260 : vector<1x128xf32>
    %263 = arith.addf %258, %262 : vector<1x128xf32>
    %c147 = arith.constant 147 : index
    %264 = memref.load %arg0[%c147] : memref<148xf32, #tpu.memory_space<smem>>
    %265 = vector.broadcast %264 : f32 to vector<1x128xf32>
    %266 = arith.addf %263, %265 : vector<1x128xf32>
    %c3_10 = arith.constant 3 : index
    %c0_11 = arith.constant 0 : index
    %267 = vector.load %arg4[%c3_10, %c0_11] : memref<8x128xf32, #tpu.memory_space<vmem>>, vector<1x128xf32>
    tpu.vector_store %arg4[%c3_10, %c0_11], %266 {strides = array<i32>} : memref<8x128xf32, #tpu.memory_space<vmem>>, vector<1x128xf32>,
    %c0_12 = arith.constant 0 : index
    %268 = memref.load %arg0[%c0_12] : memref<148xf32, #tpu.memory_space<smem>>
    %269 = vector.extract_strided_slice %10 {offsets = [4, 0], sizes = [1, 128], strides = [1, 1]} : vector<8x128xf32> to vector<1x128xf32>
    %270 = vector.broadcast %268 : f32 to vector<1x128xf32>
    %271 = arith.mulf %270, %269 : vector<1x128xf32>
    %c3_13 = arith.constant 3 : index
    %272 = memref.load %arg0[%c3_13] : memref<148xf32, #tpu.memory_space<smem>>
    %273 = vector.extract_strided_slice %10 {offsets = [5, 0], sizes = [1, 128], strides = [1, 1]} : vector<8x128xf32> to vector<1x128xf32>
    %274 = vector.broadcast %272 : f32 to vector<1x128xf32>
    %275 = arith.mulf %274, %273 : vector<1x128xf32>
    %276 = arith.addf %271, %275 : vector<1x128xf32>
    %c6_14 = arith.constant 6 : index
    %277 = memref.load %arg0[%c6_14] : memref<148xf32, #tpu.memory_space<smem>>
    %278 = vector.extract_strided_slice %10 {offsets = [6, 0], sizes = [1, 128], strides = [1, 1]} : vector<8x128xf32> to vector<1x128xf32>
    %279 = vector.broadcast %277 : f32 to vector<1x128xf32>
    %280 = arith.mulf %279, %278 : vector<1x128xf32>
    %281 = arith.addf %276, %280 : vector<1x128xf32>
    %c9_15 = arith.constant 9 : index
    %282 = memref.load %arg0[%c9_15] : memref<148xf32, #tpu.memory_space<smem>>
    %283 = vector.extract_strided_slice %10 {offsets = [7, 0], sizes = [1, 128], strides = [1, 1]} : vector<8x128xf32> to vector<1x128xf32>
    %284 = vector.broadcast %282 : f32 to vector<1x128xf32>
    %285 = arith.mulf %284, %283 : vector<1x128xf32>
    %286 = arith.addf %281, %285 : vector<1x128xf32>
    %c1_16 = arith.constant 1 : index
    %287 = memref.load %arg0[%c1_16] : memref<148xf32, #tpu.memory_space<smem>>
    %288 = vector.extract_strided_slice %5 {offsets = [4, 0], sizes = [1, 128], strides = [1, 1]} : vector<8x128xf32> to vector<1x128xf32>
    %289 = vector.broadcast %287 : f32 to vector<1x128xf32>
    %290 = arith.mulf %289, %288 : vector<1x128xf32>
    %291 = arith.addf %286, %290 : vector<1x128xf32>
    %c4_17 = arith.constant 4 : index
    %292 = memref.load %arg0[%c4_17] : memref<148xf32, #tpu.memory_space<smem>>
    %293 = vector.extract_strided_slice %5 {offsets = [5, 0], sizes = [1, 128], strides = [1, 1]} : vector<8x128xf32> to vector<1x128xf32>
    %294 = vector.broadcast %292 : f32 to vector<1x128xf32>
    %295 = arith.mulf %294, %293 : vector<1x128xf32>
    %296 = arith.addf %291, %295 : vector<1x128xf32>
    %c7_18 = arith.constant 7 : index
    %297 = memref.load %arg0[%c7_18] : memref<148xf32, #tpu.memory_space<smem>>
    %298 = vector.extract_strided_slice %5 {offsets = [6, 0], sizes = [1, 128], strides = [1, 1]} : vector<8x128xf32> to vector<1x128xf32>
    %299 = vector.broadcast %297 : f32 to vector<1x128xf32>
    %300 = arith.mulf %299, %298 : vector<1x128xf32>
    %301 = arith.addf %296, %300 : vector<1x128xf32>
    %c10_19 = arith.constant 10 : index
    %302 = memref.load %arg0[%c10_19] : memref<148xf32, #tpu.memory_space<smem>>
    %303 = vector.extract_strided_slice %5 {offsets = [7, 0], sizes = [1, 128], strides = [1, 1]} : vector<8x128xf32> to vector<1x128xf32>
    %304 = vector.broadcast %302 : f32 to vector<1x128xf32>
    %305 = arith.mulf %304, %303 : vector<1x128xf32>
    %306 = arith.addf %301, %305 : vector<1x128xf32>
    %c2_20 = arith.constant 2 : index
    %307 = memref.load %arg0[%c2_20] : memref<148xf32, #tpu.memory_space<smem>>
    %308 = vector.extract_strided_slice %15 {offsets = [4, 0], sizes = [1, 128], strides = [1, 1]} : vector<8x128xf32> to vector<1x128xf32>
    %309 = vector.broadcast %307 : f32 to vector<1x128xf32>
    %310 = arith.mulf %309, %308 : vector<1x128xf32>
    %311 = arith.addf %306, %310 : vector<1x128xf32>
    %c5_21 = arith.constant 5 : index
    %312 = memref.load %arg0[%c5_21] : memref<148xf32, #tpu.memory_space<smem>>
    %313 = vector.extract_strided_slice %15 {offsets = [5, 0], sizes = [1, 128], strides = [1, 1]} : vector<8x128xf32> to vector<1x128xf32>
    %314 = vector.broadcast %312 : f32 to vector<1x128xf32>
    %315 = arith.mulf %314, %313 : vector<1x128xf32>
    %316 = arith.addf %311, %315 : vector<1x128xf32>
    %c8_22 = arith.constant 8 : index
    %317 = memref.load %arg0[%c8_22] : memref<148xf32, #tpu.memory_space<smem>>
    %318 = vector.extract_strided_slice %15 {offsets = [6, 0], sizes = [1, 128], strides = [1, 1]} : vector<8x128xf32> to vector<1x128xf32>
    %319 = vector.broadcast %317 : f32 to vector<1x128xf32>
    %320 = arith.mulf %319, %318 : vector<1x128xf32>
    %321 = arith.addf %316, %320 : vector<1x128xf32>
    %c11_23 = arith.constant 11 : index
    %322 = memref.load %arg0[%c11_23] : memref<148xf32, #tpu.memory_space<smem>>
    %323 = vector.extract_strided_slice %15 {offsets = [7, 0], sizes = [1, 128], strides = [1, 1]} : vector<8x128xf32> to vector<1x128xf32>
    %324 = vector.broadcast %322 : f32 to vector<1x128xf32>
    %325 = arith.mulf %324, %323 : vector<1x128xf32>
    %326 = arith.addf %321, %325 : vector<1x128xf32>
    %c144_24 = arith.constant 144 : index
    %327 = memref.load %arg0[%c144_24] : memref<148xf32, #tpu.memory_space<smem>>
    %328 = vector.broadcast %327 : f32 to vector<1x128xf32>
    %329 = arith.addf %326, %328 : vector<1x128xf32>
    %c4_25 = arith.constant 4 : index
    %c0_26 = arith.constant 0 : index
    %330 = vector.load %arg4[%c4_25, %c0_26] : memref<8x128xf32, #tpu.memory_space<vmem>>, vector<1x128xf32>
    tpu.vector_store %arg4[%c4_25, %c0_26], %329 {strides = array<i32>} : memref<8x128xf32, #tpu.memory_space<vmem>>, vector<1x128xf32>,
    %c12_27 = arith.constant 12 : index
    %331 = memref.load %arg0[%c12_27] : memref<148xf32, #tpu.memory_space<smem>>
    %332 = vector.extract_strided_slice %10 {offsets = [4, 0], sizes = [1, 128], strides = [1, 1]} : vector<8x128xf32> to vector<1x128xf32>
    %333 = vector.broadcast %331 : f32 to vector<1x128xf32>
    %334 = arith.mulf %333, %332 : vector<1x128xf32>
    %c15_28 = arith.constant 15 : index
    %335 = memref.load %arg0[%c15_28] : memref<148xf32, #tpu.memory_space<smem>>
    %336 = vector.extract_strided_slice %10 {offsets = [5, 0], sizes = [1, 128], strides = [1, 1]} : vector<8x128xf32> to vector<1x128xf32>
    %337 = vector.broadcast %335 : f32 to vector<1x128xf32>
    %338 = arith.mulf %337, %336 : vector<1x128xf32>
    %339 = arith.addf %334, %338 : vector<1x128xf32>
    %c18_29 = arith.constant 18 : index
    %340 = memref.load %arg0[%c18_29] : memref<148xf32, #tpu.memory_space<smem>>
    %341 = vector.extract_strided_slice %10 {offsets = [6, 0], sizes = [1, 128], strides = [1, 1]} : vector<8x128xf32> to vector<1x128xf32>
    %342 = vector.broadcast %340 : f32 to vector<1x128xf32>
    %343 = arith.mulf %342, %341 : vector<1x128xf32>
    %344 = arith.addf %339, %343 : vector<1x128xf32>
    %c21_30 = arith.constant 21 : index
    %345 = memref.load %arg0[%c21_30] : memref<148xf32, #tpu.memory_space<smem>>
    %346 = vector.extract_strided_slice %10 {offsets = [7, 0], sizes = [1, 128], strides = [1, 1]} : vector<8x128xf32> to vector<1x128xf32>
    %347 = vector.broadcast %345 : f32 to vector<1x128xf32>
    %348 = arith.mulf %347, %346 : vector<1x128xf32>
    %349 = arith.addf %344, %348 : vector<1x128xf32>
    %c13_31 = arith.constant 13 : index
    %350 = memref.load %arg0[%c13_31] : memref<148xf32, #tpu.memory_space<smem>>
    %351 = vector.extract_strided_slice %5 {offsets = [4, 0], sizes = [1, 128], strides = [1, 1]} : vector<8x128xf32> to vector<1x128xf32>
    %352 = vector.broadcast %350 : f32 to vector<1x128xf32>
    %353 = arith.mulf %352, %351 : vector<1x128xf32>
    %354 = arith.addf %349, %353 : vector<1x128xf32>
    %c16_32 = arith.constant 16 : index
    %355 = memref.load %arg0[%c16_32] : memref<148xf32, #tpu.memory_space<smem>>
    %356 = vector.extract_strided_slice %5 {offsets = [5, 0], sizes = [1, 128], strides = [1, 1]} : vector<8x128xf32> to vector<1x128xf32>
    %357 = vector.broadcast %355 : f32 to vector<1x128xf32>
    %358 = arith.mulf %357, %356 : vector<1x128xf32>
    %359 = arith.addf %354, %358 : vector<1x128xf32>
    %c19_33 = arith.constant 19 : index
    %360 = memref.load %arg0[%c19_33] : memref<148xf32, #tpu.memory_space<smem>>
    %361 = vector.extract_strided_slice %5 {offsets = [6, 0], sizes = [1, 128], strides = [1, 1]} : vector<8x128xf32> to vector<1x128xf32>
    %362 = vector.broadcast %360 : f32 to vector<1x128xf32>
    %363 = arith.mulf %362, %361 : vector<1x128xf32>
    %364 = arith.addf %359, %363 : vector<1x128xf32>
    %c22_34 = arith.constant 22 : index
    %365 = memref.load %arg0[%c22_34] : memref<148xf32, #tpu.memory_space<smem>>
    %366 = vector.extract_strided_slice %5 {offsets = [7, 0], sizes = [1, 128], strides = [1, 1]} : vector<8x128xf32> to vector<1x128xf32>
    %367 = vector.broadcast %365 : f32 to vector<1x128xf32>
    %368 = arith.mulf %367, %366 : vector<1x128xf32>
    %369 = arith.addf %364, %368 : vector<1x128xf32>
    %c14_35 = arith.constant 14 : index
    %370 = memref.load %arg0[%c14_35] : memref<148xf32, #tpu.memory_space<smem>>
    %371 = vector.extract_strided_slice %15 {offsets = [4, 0], sizes = [1, 128], strides = [1, 1]} : vector<8x128xf32> to vector<1x128xf32>
    %372 = vector.broadcast %370 : f32 to vector<1x128xf32>
    %373 = arith.mulf %372, %371 : vector<1x128xf32>
    %374 = arith.addf %369, %373 : vector<1x128xf32>
    %c17_36 = arith.constant 17 : index
    %375 = memref.load %arg0[%c17_36] : memref<148xf32, #tpu.memory_space<smem>>
    %376 = vector.extract_strided_slice %15 {offsets = [5, 0], sizes = [1, 128], strides = [1, 1]} : vector<8x128xf32> to vector<1x128xf32>
    %377 = vector.broadcast %375 : f32 to vector<1x128xf32>
    %378 = arith.mulf %377, %376 : vector<1x128xf32>
    %379 = arith.addf %374, %378 : vector<1x128xf32>
    %c20_37 = arith.constant 20 : index
    %380 = memref.load %arg0[%c20_37] : memref<148xf32, #tpu.memory_space<smem>>
    %381 = vector.extract_strided_slice %15 {offsets = [6, 0], sizes = [1, 128], strides = [1, 1]} : vector<8x128xf32> to vector<1x128xf32>
    %382 = vector.broadcast %380 : f32 to vector<1x128xf32>
    %383 = arith.mulf %382, %381 : vector<1x128xf32>
    %384 = arith.addf %379, %383 : vector<1x128xf32>
    %c23_38 = arith.constant 23 : index
    %385 = memref.load %arg0[%c23_38] : memref<148xf32, #tpu.memory_space<smem>>
    %386 = vector.extract_strided_slice %15 {offsets = [7, 0], sizes = [1, 128], strides = [1, 1]} : vector<8x128xf32> to vector<1x128xf32>
    %387 = vector.broadcast %385 : f32 to vector<1x128xf32>
    %388 = arith.mulf %387, %386 : vector<1x128xf32>
    %389 = arith.addf %384, %388 : vector<1x128xf32>
    %c145_39 = arith.constant 145 : index
    %390 = memref.load %arg0[%c145_39] : memref<148xf32, #tpu.memory_space<smem>>
    %391 = vector.broadcast %390 : f32 to vector<1x128xf32>
    %392 = arith.addf %389, %391 : vector<1x128xf32>
    %c5_40 = arith.constant 5 : index
    %c0_41 = arith.constant 0 : index
    %393 = vector.load %arg4[%c5_40, %c0_41] : memref<8x128xf32, #tpu.memory_space<vmem>>, vector<1x128xf32>
    tpu.vector_store %arg4[%c5_40, %c0_41], %392 {strides = array<i32>} : memref<8x128xf32, #tpu.memory_space<vmem>>, vector<1x128xf32>,
    %c24_42 = arith.constant 24 : index
    %394 = memref.load %arg0[%c24_42] : memref<148xf32, #tpu.memory_space<smem>>
    %395 = vector.extract_strided_slice %10 {offsets = [4, 0], sizes = [1, 128], strides = [1, 1]} : vector<8x128xf32> to vector<1x128xf32>
    %396 = vector.broadcast %394 : f32 to vector<1x128xf32>
    %397 = arith.mulf %396, %395 : vector<1x128xf32>
    %c27_43 = arith.constant 27 : index
    %398 = memref.load %arg0[%c27_43] : memref<148xf32, #tpu.memory_space<smem>>
    %399 = vector.extract_strided_slice %10 {offsets = [5, 0], sizes = [1, 128], strides = [1, 1]} : vector<8x128xf32> to vector<1x128xf32>
    %400 = vector.broadcast %398 : f32 to vector<1x128xf32>
    %401 = arith.mulf %400, %399 : vector<1x128xf32>
    %402 = arith.addf %397, %401 : vector<1x128xf32>
    %c30_44 = arith.constant 30 : index
    %403 = memref.load %arg0[%c30_44] : memref<148xf32, #tpu.memory_space<smem>>
    %404 = vector.extract_strided_slice %10 {offsets = [6, 0], sizes = [1, 128], strides = [1, 1]} : vector<8x128xf32> to vector<1x128xf32>
    %405 = vector.broadcast %403 : f32 to vector<1x128xf32>
    %406 = arith.mulf %405, %404 : vector<1x128xf32>
    %407 = arith.addf %402, %406 : vector<1x128xf32>
    %c33_45 = arith.constant 33 : index
    %408 = memref.load %arg0[%c33_45] : memref<148xf32, #tpu.memory_space<smem>>
    %409 = vector.extract_strided_slice %10 {offsets = [7, 0], sizes = [1, 128], strides = [1, 1]} : vector<8x128xf32> to vector<1x128xf32>
    %410 = vector.broadcast %408 : f32 to vector<1x128xf32>
    %411 = arith.mulf %410, %409 : vector<1x128xf32>
    %412 = arith.addf %407, %411 : vector<1x128xf32>
    %c25_46 = arith.constant 25 : index
    %413 = memref.load %arg0[%c25_46] : memref<148xf32, #tpu.memory_space<smem>>
    %414 = vector.extract_strided_slice %5 {offsets = [4, 0], sizes = [1, 128], strides = [1, 1]} : vector<8x128xf32> to vector<1x128xf32>
    %415 = vector.broadcast %413 : f32 to vector<1x128xf32>
    %416 = arith.mulf %415, %414 : vector<1x128xf32>
    %417 = arith.addf %412, %416 : vector<1x128xf32>
    %c28_47 = arith.constant 28 : index
    %418 = memref.load %arg0[%c28_47] : memref<148xf32, #tpu.memory_space<smem>>
    %419 = vector.extract_strided_slice %5 {offsets = [5, 0], sizes = [1, 128], strides = [1, 1]} : vector<8x128xf32> to vector<1x128xf32>
    %420 = vector.broadcast %418 : f32 to vector<1x128xf32>
    %421 = arith.mulf %420, %419 : vector<1x128xf32>
    %422 = arith.addf %417, %421 : vector<1x128xf32>
    %c31_48 = arith.constant 31 : index
    %423 = memref.load %arg0[%c31_48] : memref<148xf32, #tpu.memory_space<smem>>
    %424 = vector.extract_strided_slice %5 {offsets = [6, 0], sizes = [1, 128], strides = [1, 1]} : vector<8x128xf32> to vector<1x128xf32>
    %425 = vector.broadcast %423 : f32 to vector<1x128xf32>
    %426 = arith.mulf %425, %424 : vector<1x128xf32>
    %427 = arith.addf %422, %426 : vector<1x128xf32>
    %c34_49 = arith.constant 34 : index
    %428 = memref.load %arg0[%c34_49] : memref<148xf32, #tpu.memory_space<smem>>
    %429 = vector.extract_strided_slice %5 {offsets = [7, 0], sizes = [1, 128], strides = [1, 1]} : vector<8x128xf32> to vector<1x128xf32>
    %430 = vector.broadcast %428 : f32 to vector<1x128xf32>
    %431 = arith.mulf %430, %429 : vector<1x128xf32>
    %432 = arith.addf %427, %431 : vector<1x128xf32>
    %c26_50 = arith.constant 26 : index
    %433 = memref.load %arg0[%c26_50] : memref<148xf32, #tpu.memory_space<smem>>
    %434 = vector.extract_strided_slice %15 {offsets = [4, 0], sizes = [1, 128], strides = [1, 1]} : vector<8x128xf32> to vector<1x128xf32>
    %435 = vector.broadcast %433 : f32 to vector<1x128xf32>
    %436 = arith.mulf %435, %434 : vector<1x128xf32>
    %437 = arith.addf %432, %436 : vector<1x128xf32>
    %c29_51 = arith.constant 29 : index
    %438 = memref.load %arg0[%c29_51] : memref<148xf32, #tpu.memory_space<smem>>
    %439 = vector.extract_strided_slice %15 {offsets = [5, 0], sizes = [1, 128], strides = [1, 1]} : vector<8x128xf32> to vector<1x128xf32>
    %440 = vector.broadcast %438 : f32 to vector<1x128xf32>
    %441 = arith.mulf %440, %439 : vector<1x128xf32>
    %442 = arith.addf %437, %441 : vector<1x128xf32>
    %c32_52 = arith.constant 32 : index
    %443 = memref.load %arg0[%c32_52] : memref<148xf32, #tpu.memory_space<smem>>
    %444 = vector.extract_strided_slice %15 {offsets = [6, 0], sizes = [1, 128], strides = [1, 1]} : vector<8x128xf32> to vector<1x128xf32>
    %445 = vector.broadcast %443 : f32 to vector<1x128xf32>
    %446 = arith.mulf %445, %444 : vector<1x128xf32>
    %447 = arith.addf %442, %446 : vector<1x128xf32>
    %c35_53 = arith.constant 35 : index
    %448 = memref.load %arg0[%c35_53] : memref<148xf32, #tpu.memory_space<smem>>
    %449 = vector.extract_strided_slice %15 {offsets = [7, 0], sizes = [1, 128], strides = [1, 1]} : vector<8x128xf32> to vector<1x128xf32>
    %450 = vector.broadcast %448 : f32 to vector<1x128xf32>
    %451 = arith.mulf %450, %449 : vector<1x128xf32>
    %452 = arith.addf %447, %451 : vector<1x128xf32>
    %c146_54 = arith.constant 146 : index
    %453 = memref.load %arg0[%c146_54] : memref<148xf32, #tpu.memory_space<smem>>
    %454 = vector.broadcast %453 : f32 to vector<1x128xf32>
    %455 = arith.addf %452, %454 : vector<1x128xf32>
    %c6_55 = arith.constant 6 : index
    %c0_56 = arith.constant 0 : index
    %456 = vector.load %arg4[%c6_55, %c0_56] : memref<8x128xf32, #tpu.memory_space<vmem>>, vector<1x128xf32>
    tpu.vector_store %arg4[%c6_55, %c0_56], %455 {strides = array<i32>} : memref<8x128xf32, #tpu.memory_space<vmem>>, vector<1x128xf32>,
    %c36_57 = arith.constant 36 : index
    %457 = memref.load %arg0[%c36_57] : memref<148xf32, #tpu.memory_space<smem>>
    %458 = vector.extract_strided_slice %10 {offsets = [4, 0], sizes = [1, 128], strides = [1, 1]} : vector<8x128xf32> to vector<1x128xf32>
    %459 = vector.broadcast %457 : f32 to vector<1x128xf32>
    %460 = arith.mulf %459, %458 : vector<1x128xf32>
    %c39_58 = arith.constant 39 : index
    %461 = memref.load %arg0[%c39_58] : memref<148xf32, #tpu.memory_space<smem>>
    %462 = vector.extract_strided_slice %10 {offsets = [5, 0], sizes = [1, 128], strides = [1, 1]} : vector<8x128xf32> to vector<1x128xf32>
    %463 = vector.broadcast %461 : f32 to vector<1x128xf32>
    %464 = arith.mulf %463, %462 : vector<1x128xf32>
    %465 = arith.addf %460, %464 : vector<1x128xf32>
    %c42_59 = arith.constant 42 : index
    %466 = memref.load %arg0[%c42_59] : memref<148xf32, #tpu.memory_space<smem>>
    %467 = vector.extract_strided_slice %10 {offsets = [6, 0], sizes = [1, 128], strides = [1, 1]} : vector<8x128xf32> to vector<1x128xf32>
    %468 = vector.broadcast %466 : f32 to vector<1x128xf32>
    %469 = arith.mulf %468, %467 : vector<1x128xf32>
    %470 = arith.addf %465, %469 : vector<1x128xf32>
    %c45_60 = arith.constant 45 : index
    %471 = memref.load %arg0[%c45_60] : memref<148xf32, #tpu.memory_space<smem>>
    %472 = vector.extract_strided_slice %10 {offsets = [7, 0], sizes = [1, 128], strides = [1, 1]} : vector<8x128xf32> to vector<1x128xf32>
    %473 = vector.broadcast %471 : f32 to vector<1x128xf32>
    %474 = arith.mulf %473, %472 : vector<1x128xf32>
    %475 = arith.addf %470, %474 : vector<1x128xf32>
    %c37_61 = arith.constant 37 : index
    %476 = memref.load %arg0[%c37_61] : memref<148xf32, #tpu.memory_space<smem>>
    %477 = vector.extract_strided_slice %5 {offsets = [4, 0], sizes = [1, 128], strides = [1, 1]} : vector<8x128xf32> to vector<1x128xf32>
    %478 = vector.broadcast %476 : f32 to vector<1x128xf32>
    %479 = arith.mulf %478, %477 : vector<1x128xf32>
    %480 = arith.addf %475, %479 : vector<1x128xf32>
    %c40_62 = arith.constant 40 : index
    %481 = memref.load %arg0[%c40_62] : memref<148xf32, #tpu.memory_space<smem>>
    %482 = vector.extract_strided_slice %5 {offsets = [5, 0], sizes = [1, 128], strides = [1, 1]} : vector<8x128xf32> to vector<1x128xf32>
    %483 = vector.broadcast %481 : f32 to vector<1x128xf32>
    %484 = arith.mulf %483, %482 : vector<1x128xf32>
    %485 = arith.addf %480, %484 : vector<1x128xf32>
    %c43_63 = arith.constant 43 : index
    %486 = memref.load %arg0[%c43_63] : memref<148xf32, #tpu.memory_space<smem>>
    %487 = vector.extract_strided_slice %5 {offsets = [6, 0], sizes = [1, 128], strides = [1, 1]} : vector<8x128xf32> to vector<1x128xf32>
    %488 = vector.broadcast %486 : f32 to vector<1x128xf32>
    %489 = arith.mulf %488, %487 : vector<1x128xf32>
    %490 = arith.addf %485, %489 : vector<1x128xf32>
    %c46_64 = arith.constant 46 : index
    %491 = memref.load %arg0[%c46_64] : memref<148xf32, #tpu.memory_space<smem>>
    %492 = vector.extract_strided_slice %5 {offsets = [7, 0], sizes = [1, 128], strides = [1, 1]} : vector<8x128xf32> to vector<1x128xf32>
    %493 = vector.broadcast %491 : f32 to vector<1x128xf32>
    %494 = arith.mulf %493, %492 : vector<1x128xf32>
    %495 = arith.addf %490, %494 : vector<1x128xf32>
    %c38_65 = arith.constant 38 : index
    %496 = memref.load %arg0[%c38_65] : memref<148xf32, #tpu.memory_space<smem>>
    %497 = vector.extract_strided_slice %15 {offsets = [4, 0], sizes = [1, 128], strides = [1, 1]} : vector<8x128xf32> to vector<1x128xf32>
    %498 = vector.broadcast %496 : f32 to vector<1x128xf32>
    %499 = arith.mulf %498, %497 : vector<1x128xf32>
    %500 = arith.addf %495, %499 : vector<1x128xf32>
    %c41_66 = arith.constant 41 : index
    %501 = memref.load %arg0[%c41_66] : memref<148xf32, #tpu.memory_space<smem>>
    %502 = vector.extract_strided_slice %15 {offsets = [5, 0], sizes = [1, 128], strides = [1, 1]} : vector<8x128xf32> to vector<1x128xf32>
    %503 = vector.broadcast %501 : f32 to vector<1x128xf32>
    %504 = arith.mulf %503, %502 : vector<1x128xf32>
    %505 = arith.addf %500, %504 : vector<1x128xf32>
    %c44_67 = arith.constant 44 : index
    %506 = memref.load %arg0[%c44_67] : memref<148xf32, #tpu.memory_space<smem>>
    %507 = vector.extract_strided_slice %15 {offsets = [6, 0], sizes = [1, 128], strides = [1, 1]} : vector<8x128xf32> to vector<1x128xf32>
    %508 = vector.broadcast %506 : f32 to vector<1x128xf32>
    %509 = arith.mulf %508, %507 : vector<1x128xf32>
    %510 = arith.addf %505, %509 : vector<1x128xf32>
    %c47_68 = arith.constant 47 : index
    %511 = memref.load %arg0[%c47_68] : memref<148xf32, #tpu.memory_space<smem>>
    %512 = vector.extract_strided_slice %15 {offsets = [7, 0], sizes = [1, 128], strides = [1, 1]} : vector<8x128xf32> to vector<1x128xf32>
    %513 = vector.broadcast %511 : f32 to vector<1x128xf32>
    %514 = arith.mulf %513, %512 : vector<1x128xf32>
    %515 = arith.addf %510, %514 : vector<1x128xf32>
    %c147_69 = arith.constant 147 : index
    %516 = memref.load %arg0[%c147_69] : memref<148xf32, #tpu.memory_space<smem>>
    %517 = vector.broadcast %516 : f32 to vector<1x128xf32>
    %518 = arith.addf %515, %517 : vector<1x128xf32>
    %c7_70 = arith.constant 7 : index
    %c0_71 = arith.constant 0 : index
    %519 = vector.load %arg4[%c7_70, %c0_71] : memref<8x128xf32, #tpu.memory_space<vmem>>, vector<1x128xf32>
    tpu.vector_store %arg4[%c7_70, %c0_71], %518 {strides = array<i32>} : memref<8x128xf32, #tpu.memory_space<vmem>>, vector<1x128xf32>,
    %c0_72 = arith.constant 0 : index
    %c0_73 = arith.constant 0 : index
    %520 = vector.load %arg4[%c0_72, %c0_73] : memref<8x128xf32, #tpu.memory_space<vmem>>, vector<8x128xf32>
    %cst_74 = arith.constant 0.000000e+00 : f32
    %521 = vector.broadcast %cst_74 : f32 to vector<8x128xf32>
    %522 = arith.maximumf %520, %521 : vector<8x128xf32>
    %c0_75 = arith.constant 0 : index
    %c0_76 = arith.constant 0 : index
    %c0_77 = arith.constant 0 : index
    %523 = vector.load %arg1[%c0_75, %c0_76, %c0_77] : memref<6x8x1xf32, #tpu.memory_space<vmem>>, vector<1x8x1xf32>
    %524 = vector.shape_cast %523 : vector<1x8x1xf32> to vector<8x1xf32>
    %c1_78 = arith.constant 1 : index
    %c0_79 = arith.constant 0 : index
    %c0_80 = arith.constant 0 : index
    %525 = vector.load %arg1[%c1_78, %c0_79, %c0_80] : memref<6x8x1xf32, #tpu.memory_space<vmem>>, vector<1x8x1xf32>
    %526 = vector.shape_cast %525 : vector<1x8x1xf32> to vector<8x1xf32>
    %cst_81 = arith.constant dense<0.000000e+00> : vector<8xf32>
    %527 = vector.multi_reduction <add>, %522, %cst_81 [1] : vector<8x128xf32> to vector<8xf32>
    %528 = vector.shape_cast %527 : vector<8xf32> to vector<8x1xf32>
    %529 = arith.mulf %522, %522 : vector<8x128xf32>
    %cst_82 = arith.constant dense<0.000000e+00> : vector<8xf32>
    %530 = vector.multi_reduction <add>, %529, %cst_82 [1] : vector<8x128xf32> to vector<8xf32>
    %531 = vector.shape_cast %530 : vector<8xf32> to vector<8x1xf32>
    %c4_i32 = arith.constant 4 : i32
    %532 = tpu.dynamic_rotate %528 by %c4_i32 dim 0 : vector<8x1xf32>, i32 -> vector<8x1xf32>
    %533 = arith.addf %528, %532 : vector<8x1xf32>
    %cst_83 = arith.constant 3.906250e-03 : f32
    %534 = vector.broadcast %cst_83 : f32 to vector<8x1xf32>
    %535 = arith.mulf %533, %534 : vector<8x1xf32>
    %c4_i32_84 = arith.constant 4 : i32
    %536 = tpu.dynamic_rotate %531 by %c4_i32_84 dim 0 : vector<8x1xf32>, i32 -> vector<8x1xf32>
    %537 = arith.addf %531, %536 : vector<8x1xf32>
    %cst_85 = arith.constant 3.906250e-03 : f32
    %538 = vector.broadcast %cst_85 : f32 to vector<8x1xf32>
    %539 = arith.mulf %537, %538 : vector<8x1xf32>
    %540 = arith.mulf %535, %535 : vector<8x1xf32>
    %541 = arith.subf %539, %540 : vector<8x1xf32>
    %cst_86 = arith.constant 0.000000e+00 : f32
    %542 = vector.broadcast %cst_86 : f32 to vector<8x1xf32>
    %543 = arith.maximumf %541, %542 : vector<8x1xf32>
    %cst_87 = arith.constant 9.99999974E-6 : f32
    %544 = vector.broadcast %cst_87 : f32 to vector<8x1xf32>
    %545 = arith.addf %543, %544 : vector<8x1xf32>
    %546 = math.rsqrt %545 : vector<8x1xf32>
    %547 = arith.mulf %524, %546 : vector<8x1xf32>
    %548 = arith.mulf %535, %547 : vector<8x1xf32>
    %549 = arith.subf %526, %548 : vector<8x1xf32>
    %550 = vector.broadcast %547 : vector<8x1xf32> to vector<8x128xf32>
    %551 = arith.mulf %522, %550 : vector<8x128xf32>
    %552 = vector.broadcast %549 : vector<8x1xf32> to vector<8x128xf32>
    %553 = arith.addf %551, %552 : vector<8x128xf32>
    %c1_i32_88 = arith.constant 1 : i32
    %554 = tpu.dynamic_rotate %553 by %c1_i32_88 dim 1 : vector<8x128xf32>, i32 -> vector<8x128xf32>
    %cst_89 = arith.constant 0.000000e+00 : f32
    %555 = vector.shape_cast %2 : vector<1x128xi1> to vector<1x128xi1>
    %556 = vector.broadcast %555 : vector<1x128xi1> to vector<8x128xi1>
    %557 = vector.broadcast %cst_89 : f32 to vector<8x128xf32>
    %558 = arith.select %556, %554, %557 : vector<8x128xi1>, vector<8x128xf32>
    %c127_i32_90 = arith.constant 127 : i32
    %559 = tpu.dynamic_rotate %553 by %c127_i32_90 dim 1 : vector<8x128xf32>, i32 -> vector<8x128xf32>
    %cst_91 = arith.constant 0.000000e+00 : f32
    %560 = vector.shape_cast %4 : vector<1x128xi1> to vector<1x128xi1>
    %561 = vector.broadcast %560 : vector<1x128xi1> to vector<8x128xi1>
    %562 = vector.broadcast %cst_91 : f32 to vector<8x128xf32>
    %563 = arith.select %561, %559, %562 : vector<8x128xi1>, vector<8x128xf32>
    %c48 = arith.constant 48 : index
    %564 = memref.load %arg0[%c48] : memref<148xf32, #tpu.memory_space<smem>>
    %565 = vector.extract_strided_slice %558 {offsets = [0, 0], sizes = [1, 128], strides = [1, 1]} : vector<8x128xf32> to vector<1x128xf32>
    %566 = vector.broadcast %564 : f32 to vector<1x128xf32>
    %567 = arith.mulf %566, %565 : vector<1x128xf32>
    %c51 = arith.constant 51 : index
    %568 = memref.load %arg0[%c51] : memref<148xf32, #tpu.memory_space<smem>>
    %569 = vector.extract_strided_slice %558 {offsets = [1, 0], sizes = [1, 128], strides = [1, 1]} : vector<8x128xf32> to vector<1x128xf32>
    %570 = vector.broadcast %568 : f32 to vector<1x128xf32>
    %571 = arith.mulf %570, %569 : vector<1x128xf32>
    %572 = arith.addf %567, %571 : vector<1x128xf32>
    %c54 = arith.constant 54 : index
    %573 = memref.load %arg0[%c54] : memref<148xf32, #tpu.memory_space<smem>>
    %574 = vector.extract_strided_slice %558 {offsets = [2, 0], sizes = [1, 128], strides = [1, 1]} : vector<8x128xf32> to vector<1x128xf32>
    %575 = vector.broadcast %573 : f32 to vector<1x128xf32>
    %576 = arith.mulf %575, %574 : vector<1x128xf32>
    %577 = arith.addf %572, %576 : vector<1x128xf32>
    %c57 = arith.constant 57 : index
    %578 = memref.load %arg0[%c57] : memref<148xf32, #tpu.memory_space<smem>>
    %579 = vector.extract_strided_slice %558 {offsets = [3, 0], sizes = [1, 128], strides = [1, 1]} : vector<8x128xf32> to vector<1x128xf32>
    %580 = vector.broadcast %578 : f32 to vector<1x128xf32>
    %581 = arith.mulf %580, %579 : vector<1x128xf32>
    %582 = arith.addf %577, %581 : vector<1x128xf32>
    %c49 = arith.constant 49 : index
    %583 = memref.load %arg0[%c49] : memref<148xf32, #tpu.memory_space<smem>>
    %584 = vector.extract_strided_slice %553 {offsets = [0, 0], sizes = [1, 128], strides = [1, 1]} : vector<8x128xf32> to vector<1x128xf32>
    %585 = vector.broadcast %583 : f32 to vector<1x128xf32>
    %586 = arith.mulf %585, %584 : vector<1x128xf32>
    %587 = arith.addf %582, %586 : vector<1x128xf32>
    %c52 = arith.constant 52 : index
    %588 = memref.load %arg0[%c52] : memref<148xf32, #tpu.memory_space<smem>>
    %589 = vector.extract_strided_slice %553 {offsets = [1, 0], sizes = [1, 128], strides = [1, 1]} : vector<8x128xf32> to vector<1x128xf32>
    %590 = vector.broadcast %588 : f32 to vector<1x128xf32>
    %591 = arith.mulf %590, %589 : vector<1x128xf32>
    %592 = arith.addf %587, %591 : vector<1x128xf32>
    %c55 = arith.constant 55 : index
    %593 = memref.load %arg0[%c55] : memref<148xf32, #tpu.memory_space<smem>>
    %594 = vector.extract_strided_slice %553 {offsets = [2, 0], sizes = [1, 128], strides = [1, 1]} : vector<8x128xf32> to vector<1x128xf32>
    %595 = vector.broadcast %593 : f32 to vector<1x128xf32>
    %596 = arith.mulf %595, %594 : vector<1x128xf32>
    %597 = arith.addf %592, %596 : vector<1x128xf32>
    %c58 = arith.constant 58 : index
    %598 = memref.load %arg0[%c58] : memref<148xf32, #tpu.memory_space<smem>>
    %599 = vector.extract_strided_slice %553 {offsets = [3, 0], sizes = [1, 128], strides = [1, 1]} : vector<8x128xf32> to vector<1x128xf32>
    %600 = vector.broadcast %598 : f32 to vector<1x128xf32>
    %601 = arith.mulf %600, %599 : vector<1x128xf32>
    %602 = arith.addf %597, %601 : vector<1x128xf32>
    %c50 = arith.constant 50 : index
    %603 = memref.load %arg0[%c50] : memref<148xf32, #tpu.memory_space<smem>>
    %604 = vector.extract_strided_slice %563 {offsets = [0, 0], sizes = [1, 128], strides = [1, 1]} : vector<8x128xf32> to vector<1x128xf32>
    %605 = vector.broadcast %603 : f32 to vector<1x128xf32>
    %606 = arith.mulf %605, %604 : vector<1x128xf32>
    %607 = arith.addf %602, %606 : vector<1x128xf32>
    %c53 = arith.constant 53 : index
    %608 = memref.load %arg0[%c53] : memref<148xf32, #tpu.memory_space<smem>>
    %609 = vector.extract_strided_slice %563 {offsets = [1, 0], sizes = [1, 128], strides = [1, 1]} : vector<8x128xf32> to vector<1x128xf32>
    %610 = vector.broadcast %608 : f32 to vector<1x128xf32>
    %611 = arith.mulf %610, %609 : vector<1x128xf32>
    %612 = arith.addf %607, %611 : vector<1x128xf32>
    %c56 = arith.constant 56 : index
    %613 = memref.load %arg0[%c56] : memref<148xf32, #tpu.memory_space<smem>>
    %614 = vector.extract_strided_slice %563 {offsets = [2, 0], sizes = [1, 128], strides = [1, 1]} : vector<8x128xf32> to vector<1x128xf32>
    %615 = vector.broadcast %613 : f32 to vector<1x128xf32>
    %616 = arith.mulf %615, %614 : vector<1x128xf32>
    %617 = arith.addf %612, %616 : vector<1x128xf32>
    %c59 = arith.constant 59 : index
    %618 = memref.load %arg0[%c59] : memref<148xf32, #tpu.memory_space<smem>>
    %619 = vector.extract_strided_slice %563 {offsets = [3, 0], sizes = [1, 128], strides = [1, 1]} : vector<8x128xf32> to vector<1x128xf32>
    %620 = vector.broadcast %618 : f32 to vector<1x128xf32>
    %621 = arith.mulf %620, %619 : vector<1x128xf32>
    %622 = arith.addf %617, %621 : vector<1x128xf32>
    %c0_92 = arith.constant 0 : index
    %c0_93 = arith.constant 0 : index
    %623 = vector.load %arg4[%c0_92, %c0_93] : memref<8x128xf32, #tpu.memory_space<vmem>>, vector<1x128xf32>
    tpu.vector_store %arg4[%c0_92, %c0_93], %622 {strides = array<i32>} : memref<8x128xf32, #tpu.memory_space<vmem>>, vector<1x128xf32>,
    %c60 = arith.constant 60 : index
    %624 = memref.load %arg0[%c60] : memref<148xf32, #tpu.memory_space<smem>>
    %625 = vector.extract_strided_slice %558 {offsets = [0, 0], sizes = [1, 128], strides = [1, 1]} : vector<8x128xf32> to vector<1x128xf32>
    %626 = vector.broadcast %624 : f32 to vector<1x128xf32>
    %627 = arith.mulf %626, %625 : vector<1x128xf32>
    %c63 = arith.constant 63 : index
    %628 = memref.load %arg0[%c63] : memref<148xf32, #tpu.memory_space<smem>>
    %629 = vector.extract_strided_slice %558 {offsets = [1, 0], sizes = [1, 128], strides = [1, 1]} : vector<8x128xf32> to vector<1x128xf32>
    %630 = vector.broadcast %628 : f32 to vector<1x128xf32>
    %631 = arith.mulf %630, %629 : vector<1x128xf32>
    %632 = arith.addf %627, %631 : vector<1x128xf32>
    %c66 = arith.constant 66 : index
    %633 = memref.load %arg0[%c66] : memref<148xf32, #tpu.memory_space<smem>>
    %634 = vector.extract_strided_slice %558 {offsets = [2, 0], sizes = [1, 128], strides = [1, 1]} : vector<8x128xf32> to vector<1x128xf32>
    %635 = vector.broadcast %633 : f32 to vector<1x128xf32>
    %636 = arith.mulf %635, %634 : vector<1x128xf32>
    %637 = arith.addf %632, %636 : vector<1x128xf32>
    %c69 = arith.constant 69 : index
    %638 = memref.load %arg0[%c69] : memref<148xf32, #tpu.memory_space<smem>>
    %639 = vector.extract_strided_slice %558 {offsets = [3, 0], sizes = [1, 128], strides = [1, 1]} : vector<8x128xf32> to vector<1x128xf32>
    %640 = vector.broadcast %638 : f32 to vector<1x128xf32>
    %641 = arith.mulf %640, %639 : vector<1x128xf32>
    %642 = arith.addf %637, %641 : vector<1x128xf32>
    %c61 = arith.constant 61 : index
    %643 = memref.load %arg0[%c61] : memref<148xf32, #tpu.memory_space<smem>>
    %644 = vector.extract_strided_slice %553 {offsets = [0, 0], sizes = [1, 128], strides = [1, 1]} : vector<8x128xf32> to vector<1x128xf32>
    %645 = vector.broadcast %643 : f32 to vector<1x128xf32>
    %646 = arith.mulf %645, %644 : vector<1x128xf32>
    %647 = arith.addf %642, %646 : vector<1x128xf32>
    %c64 = arith.constant 64 : index
    %648 = memref.load %arg0[%c64] : memref<148xf32, #tpu.memory_space<smem>>
    %649 = vector.extract_strided_slice %553 {offsets = [1, 0], sizes = [1, 128], strides = [1, 1]} : vector<8x128xf32> to vector<1x128xf32>
    %650 = vector.broadcast %648 : f32 to vector<1x128xf32>
    %651 = arith.mulf %650, %649 : vector<1x128xf32>
    %652 = arith.addf %647, %651 : vector<1x128xf32>
    %c67 = arith.constant 67 : index
    %653 = memref.load %arg0[%c67] : memref<148xf32, #tpu.memory_space<smem>>
    %654 = vector.extract_strided_slice %553 {offsets = [2, 0], sizes = [1, 128], strides = [1, 1]} : vector<8x128xf32> to vector<1x128xf32>
    %655 = vector.broadcast %653 : f32 to vector<1x128xf32>
    %656 = arith.mulf %655, %654 : vector<1x128xf32>
    %657 = arith.addf %652, %656 : vector<1x128xf32>
    %c70 = arith.constant 70 : index
    %658 = memref.load %arg0[%c70] : memref<148xf32, #tpu.memory_space<smem>>
    %659 = vector.extract_strided_slice %553 {offsets = [3, 0], sizes = [1, 128], strides = [1, 1]} : vector<8x128xf32> to vector<1x128xf32>
    %660 = vector.broadcast %658 : f32 to vector<1x128xf32>
    %661 = arith.mulf %660, %659 : vector<1x128xf32>
    %662 = arith.addf %657, %661 : vector<1x128xf32>
    %c62 = arith.constant 62 : index
    %663 = memref.load %arg0[%c62] : memref<148xf32, #tpu.memory_space<smem>>
    %664 = vector.extract_strided_slice %563 {offsets = [0, 0], sizes = [1, 128], strides = [1, 1]} : vector<8x128xf32> to vector<1x128xf32>
    %665 = vector.broadcast %663 : f32 to vector<1x128xf32>
    %666 = arith.mulf %665, %664 : vector<1x128xf32>
    %667 = arith.addf %662, %666 : vector<1x128xf32>
    %c65 = arith.constant 65 : index
    %668 = memref.load %arg0[%c65] : memref<148xf32, #tpu.memory_space<smem>>
    %669 = vector.extract_strided_slice %563 {offsets = [1, 0], sizes = [1, 128], strides = [1, 1]} : vector<8x128xf32> to vector<1x128xf32>
    %670 = vector.broadcast %668 : f32 to vector<1x128xf32>
    %671 = arith.mulf %670, %669 : vector<1x128xf32>
    %672 = arith.addf %667, %671 : vector<1x128xf32>
    %c68 = arith.constant 68 : index
    %673 = memref.load %arg0[%c68] : memref<148xf32, #tpu.memory_space<smem>>
    %674 = vector.extract_strided_slice %563 {offsets = [2, 0], sizes = [1, 128], strides = [1, 1]} : vector<8x128xf32> to vector<1x128xf32>
    %675 = vector.broadcast %673 : f32 to vector<1x128xf32>
    %676 = arith.mulf %675, %674 : vector<1x128xf32>
    %677 = arith.addf %672, %676 : vector<1x128xf32>
    %c71 = arith.constant 71 : index
    %678 = memref.load %arg0[%c71] : memref<148xf32, #tpu.memory_space<smem>>
    %679 = vector.extract_strided_slice %563 {offsets = [3, 0], sizes = [1, 128], strides = [1, 1]} : vector<8x128xf32> to vector<1x128xf32>
    %680 = vector.broadcast %678 : f32 to vector<1x128xf32>
    %681 = arith.mulf %680, %679 : vector<1x128xf32>
    %682 = arith.addf %677, %681 : vector<1x128xf32>
    %c1_94 = arith.constant 1 : index
    %c0_95 = arith.constant 0 : index
    %683 = vector.load %arg4[%c1_94, %c0_95] : memref<8x128xf32, #tpu.memory_space<vmem>>, vector<1x128xf32>
    tpu.vector_store %arg4[%c1_94, %c0_95], %682 {strides = array<i32>} : memref<8x128xf32, #tpu.memory_space<vmem>>, vector<1x128xf32>,
    %c72 = arith.constant 72 : index
    %684 = memref.load %arg0[%c72] : memref<148xf32, #tpu.memory_space<smem>>
    %685 = vector.extract_strided_slice %558 {offsets = [0, 0], sizes = [1, 128], strides = [1, 1]} : vector<8x128xf32> to vector<1x128xf32>
    %686 = vector.broadcast %684 : f32 to vector<1x128xf32>
    %687 = arith.mulf %686, %685 : vector<1x128xf32>
    %c75 = arith.constant 75 : index
    %688 = memref.load %arg0[%c75] : memref<148xf32, #tpu.memory_space<smem>>
    %689 = vector.extract_strided_slice %558 {offsets = [1, 0], sizes = [1, 128], strides = [1, 1]} : vector<8x128xf32> to vector<1x128xf32>
    %690 = vector.broadcast %688 : f32 to vector<1x128xf32>
    %691 = arith.mulf %690, %689 : vector<1x128xf32>
    %692 = arith.addf %687, %691 : vector<1x128xf32>
    %c78 = arith.constant 78 : index
    %693 = memref.load %arg0[%c78] : memref<148xf32, #tpu.memory_space<smem>>
    %694 = vector.extract_strided_slice %558 {offsets = [2, 0], sizes = [1, 128], strides = [1, 1]} : vector<8x128xf32> to vector<1x128xf32>
    %695 = vector.broadcast %693 : f32 to vector<1x128xf32>
    %696 = arith.mulf %695, %694 : vector<1x128xf32>
    %697 = arith.addf %692, %696 : vector<1x128xf32>
    %c81 = arith.constant 81 : index
    %698 = memref.load %arg0[%c81] : memref<148xf32, #tpu.memory_space<smem>>
    %699 = vector.extract_strided_slice %558 {offsets = [3, 0], sizes = [1, 128], strides = [1, 1]} : vector<8x128xf32> to vector<1x128xf32>
    %700 = vector.broadcast %698 : f32 to vector<1x128xf32>
    %701 = arith.mulf %700, %699 : vector<1x128xf32>
    %702 = arith.addf %697, %701 : vector<1x128xf32>
    %c73 = arith.constant 73 : index
    %703 = memref.load %arg0[%c73] : memref<148xf32, #tpu.memory_space<smem>>
    %704 = vector.extract_strided_slice %553 {offsets = [0, 0], sizes = [1, 128], strides = [1, 1]} : vector<8x128xf32> to vector<1x128xf32>
    %705 = vector.broadcast %703 : f32 to vector<1x128xf32>
    %706 = arith.mulf %705, %704 : vector<1x128xf32>
    %707 = arith.addf %702, %706 : vector<1x128xf32>
    %c76 = arith.constant 76 : index
    %708 = memref.load %arg0[%c76] : memref<148xf32, #tpu.memory_space<smem>>
    %709 = vector.extract_strided_slice %553 {offsets = [1, 0], sizes = [1, 128], strides = [1, 1]} : vector<8x128xf32> to vector<1x128xf32>
    %710 = vector.broadcast %708 : f32 to vector<1x128xf32>
    %711 = arith.mulf %710, %709 : vector<1x128xf32>
    %712 = arith.addf %707, %711 : vector<1x128xf32>
    %c79 = arith.constant 79 : index
    %713 = memref.load %arg0[%c79] : memref<148xf32, #tpu.memory_space<smem>>
    %714 = vector.extract_strided_slice %553 {offsets = [2, 0], sizes = [1, 128], strides = [1, 1]} : vector<8x128xf32> to vector<1x128xf32>
    %715 = vector.broadcast %713 : f32 to vector<1x128xf32>
    %716 = arith.mulf %715, %714 : vector<1x128xf32>
    %717 = arith.addf %712, %716 : vector<1x128xf32>
    %c82 = arith.constant 82 : index
    %718 = memref.load %arg0[%c82] : memref<148xf32, #tpu.memory_space<smem>>
    %719 = vector.extract_strided_slice %553 {offsets = [3, 0], sizes = [1, 128], strides = [1, 1]} : vector<8x128xf32> to vector<1x128xf32>
    %720 = vector.broadcast %718 : f32 to vector<1x128xf32>
    %721 = arith.mulf %720, %719 : vector<1x128xf32>
    %722 = arith.addf %717, %721 : vector<1x128xf32>
    %c74 = arith.constant 74 : index
    %723 = memref.load %arg0[%c74] : memref<148xf32, #tpu.memory_space<smem>>
    %724 = vector.extract_strided_slice %563 {offsets = [0, 0], sizes = [1, 128], strides = [1, 1]} : vector<8x128xf32> to vector<1x128xf32>
    %725 = vector.broadcast %723 : f32 to vector<1x128xf32>
    %726 = arith.mulf %725, %724 : vector<1x128xf32>
    %727 = arith.addf %722, %726 : vector<1x128xf32>
    %c77 = arith.constant 77 : index
    %728 = memref.load %arg0[%c77] : memref<148xf32, #tpu.memory_space<smem>>
    %729 = vector.extract_strided_slice %563 {offsets = [1, 0], sizes = [1, 128], strides = [1, 1]} : vector<8x128xf32> to vector<1x128xf32>
    %730 = vector.broadcast %728 : f32 to vector<1x128xf32>
    %731 = arith.mulf %730, %729 : vector<1x128xf32>
    %732 = arith.addf %727, %731 : vector<1x128xf32>
    %c80 = arith.constant 80 : index
    %733 = memref.load %arg0[%c80] : memref<148xf32, #tpu.memory_space<smem>>
    %734 = vector.extract_strided_slice %563 {offsets = [2, 0], sizes = [1, 128], strides = [1, 1]} : vector<8x128xf32> to vector<1x128xf32>
    %735 = vector.broadcast %733 : f32 to vector<1x128xf32>
    %736 = arith.mulf %735, %734 : vector<1x128xf32>
    %737 = arith.addf %732, %736 : vector<1x128xf32>
    %c83 = arith.constant 83 : index
    %738 = memref.load %arg0[%c83] : memref<148xf32, #tpu.memory_space<smem>>
    %739 = vector.extract_strided_slice %563 {offsets = [3, 0], sizes = [1, 128], strides = [1, 1]} : vector<8x128xf32> to vector<1x128xf32>
    %740 = vector.broadcast %738 : f32 to vector<1x128xf32>
    %741 = arith.mulf %740, %739 : vector<1x128xf32>
    %742 = arith.addf %737, %741 : vector<1x128xf32>
    %c2_96 = arith.constant 2 : index
    %c0_97 = arith.constant 0 : index
    %743 = vector.load %arg4[%c2_96, %c0_97] : memref<8x128xf32, #tpu.memory_space<vmem>>, vector<1x128xf32>
    tpu.vector_store %arg4[%c2_96, %c0_97], %742 {strides = array<i32>} : memref<8x128xf32, #tpu.memory_space<vmem>>, vector<1x128xf32>,
    %c84 = arith.constant 84 : index
    %744 = memref.load %arg0[%c84] : memref<148xf32, #tpu.memory_space<smem>>
    %745 = vector.extract_strided_slice %558 {offsets = [0, 0], sizes = [1, 128], strides = [1, 1]} : vector<8x128xf32> to vector<1x128xf32>
    %746 = vector.broadcast %744 : f32 to vector<1x128xf32>
    %747 = arith.mulf %746, %745 : vector<1x128xf32>
    %c87 = arith.constant 87 : index
    %748 = memref.load %arg0[%c87] : memref<148xf32, #tpu.memory_space<smem>>
    %749 = vector.extract_strided_slice %558 {offsets = [1, 0], sizes = [1, 128], strides = [1, 1]} : vector<8x128xf32> to vector<1x128xf32>
    %750 = vector.broadcast %748 : f32 to vector<1x128xf32>
    %751 = arith.mulf %750, %749 : vector<1x128xf32>
    %752 = arith.addf %747, %751 : vector<1x128xf32>
    %c90 = arith.constant 90 : index
    %753 = memref.load %arg0[%c90] : memref<148xf32, #tpu.memory_space<smem>>
    %754 = vector.extract_strided_slice %558 {offsets = [2, 0], sizes = [1, 128], strides = [1, 1]} : vector<8x128xf32> to vector<1x128xf32>
    %755 = vector.broadcast %753 : f32 to vector<1x128xf32>
    %756 = arith.mulf %755, %754 : vector<1x128xf32>
    %757 = arith.addf %752, %756 : vector<1x128xf32>
    %c93 = arith.constant 93 : index
    %758 = memref.load %arg0[%c93] : memref<148xf32, #tpu.memory_space<smem>>
    %759 = vector.extract_strided_slice %558 {offsets = [3, 0], sizes = [1, 128], strides = [1, 1]} : vector<8x128xf32> to vector<1x128xf32>
    %760 = vector.broadcast %758 : f32 to vector<1x128xf32>
    %761 = arith.mulf %760, %759 : vector<1x128xf32>
    %762 = arith.addf %757, %761 : vector<1x128xf32>
    %c85 = arith.constant 85 : index
    %763 = memref.load %arg0[%c85] : memref<148xf32, #tpu.memory_space<smem>>
    %764 = vector.extract_strided_slice %553 {offsets = [0, 0], sizes = [1, 128], strides = [1, 1]} : vector<8x128xf32> to vector<1x128xf32>
    %765 = vector.broadcast %763 : f32 to vector<1x128xf32>
    %766 = arith.mulf %765, %764 : vector<1x128xf32>
    %767 = arith.addf %762, %766 : vector<1x128xf32>
    %c88 = arith.constant 88 : index
    %768 = memref.load %arg0[%c88] : memref<148xf32, #tpu.memory_space<smem>>
    %769 = vector.extract_strided_slice %553 {offsets = [1, 0], sizes = [1, 128], strides = [1, 1]} : vector<8x128xf32> to vector<1x128xf32>
    %770 = vector.broadcast %768 : f32 to vector<1x128xf32>
    %771 = arith.mulf %770, %769 : vector<1x128xf32>
    %772 = arith.addf %767, %771 : vector<1x128xf32>
    %c91 = arith.constant 91 : index
    %773 = memref.load %arg0[%c91] : memref<148xf32, #tpu.memory_space<smem>>
    %774 = vector.extract_strided_slice %553 {offsets = [2, 0], sizes = [1, 128], strides = [1, 1]} : vector<8x128xf32> to vector<1x128xf32>
    %775 = vector.broadcast %773 : f32 to vector<1x128xf32>
    %776 = arith.mulf %775, %774 : vector<1x128xf32>
    %777 = arith.addf %772, %776 : vector<1x128xf32>
    %c94 = arith.constant 94 : index
    %778 = memref.load %arg0[%c94] : memref<148xf32, #tpu.memory_space<smem>>
    %779 = vector.extract_strided_slice %553 {offsets = [3, 0], sizes = [1, 128], strides = [1, 1]} : vector<8x128xf32> to vector<1x128xf32>
    %780 = vector.broadcast %778 : f32 to vector<1x128xf32>
    %781 = arith.mulf %780, %779 : vector<1x128xf32>
    %782 = arith.addf %777, %781 : vector<1x128xf32>
    %c86 = arith.constant 86 : index
    %783 = memref.load %arg0[%c86] : memref<148xf32, #tpu.memory_space<smem>>
    %784 = vector.extract_strided_slice %563 {offsets = [0, 0], sizes = [1, 128], strides = [1, 1]} : vector<8x128xf32> to vector<1x128xf32>
    %785 = vector.broadcast %783 : f32 to vector<1x128xf32>
    %786 = arith.mulf %785, %784 : vector<1x128xf32>
    %787 = arith.addf %782, %786 : vector<1x128xf32>
    %c89 = arith.constant 89 : index
    %788 = memref.load %arg0[%c89] : memref<148xf32, #tpu.memory_space<smem>>
    %789 = vector.extract_strided_slice %563 {offsets = [1, 0], sizes = [1, 128], strides = [1, 1]} : vector<8x128xf32> to vector<1x128xf32>
    %790 = vector.broadcast %788 : f32 to vector<1x128xf32>
    %791 = arith.mulf %790, %789 : vector<1x128xf32>
    %792 = arith.addf %787, %791 : vector<1x128xf32>
    %c92 = arith.constant 92 : index
    %793 = memref.load %arg0[%c92] : memref<148xf32, #tpu.memory_space<smem>>
    %794 = vector.extract_strided_slice %563 {offsets = [2, 0], sizes = [1, 128], strides = [1, 1]} : vector<8x128xf32> to vector<1x128xf32>
    %795 = vector.broadcast %793 : f32 to vector<1x128xf32>
    %796 = arith.mulf %795, %794 : vector<1x128xf32>
    %797 = arith.addf %792, %796 : vector<1x128xf32>
    %c95 = arith.constant 95 : index
    %798 = memref.load %arg0[%c95] : memref<148xf32, #tpu.memory_space<smem>>
    %799 = vector.extract_strided_slice %563 {offsets = [3, 0], sizes = [1, 128], strides = [1, 1]} : vector<8x128xf32> to vector<1x128xf32>
    %800 = vector.broadcast %798 : f32 to vector<1x128xf32>
    %801 = arith.mulf %800, %799 : vector<1x128xf32>
    %802 = arith.addf %797, %801 : vector<1x128xf32>
    %c3_98 = arith.constant 3 : index
    %c0_99 = arith.constant 0 : index
    %803 = vector.load %arg4[%c3_98, %c0_99] : memref<8x128xf32, #tpu.memory_space<vmem>>, vector<1x128xf32>
    tpu.vector_store %arg4[%c3_98, %c0_99], %802 {strides = array<i32>} : memref<8x128xf32, #tpu.memory_space<vmem>>, vector<1x128xf32>,
    %c48_100 = arith.constant 48 : index
    %804 = memref.load %arg0[%c48_100] : memref<148xf32, #tpu.memory_space<smem>>
    %805 = vector.extract_strided_slice %558 {offsets = [4, 0], sizes = [1, 128], strides = [1, 1]} : vector<8x128xf32> to vector<1x128xf32>
    %806 = vector.broadcast %804 : f32 to vector<1x128xf32>
    %807 = arith.mulf %806, %805 : vector<1x128xf32>
    %c51_101 = arith.constant 51 : index
    %808 = memref.load %arg0[%c51_101] : memref<148xf32, #tpu.memory_space<smem>>
    %809 = vector.extract_strided_slice %558 {offsets = [5, 0], sizes = [1, 128], strides = [1, 1]} : vector<8x128xf32> to vector<1x128xf32>
    %810 = vector.broadcast %808 : f32 to vector<1x128xf32>
    %811 = arith.mulf %810, %809 : vector<1x128xf32>
    %812 = arith.addf %807, %811 : vector<1x128xf32>
    %c54_102 = arith.constant 54 : index
    %813 = memref.load %arg0[%c54_102] : memref<148xf32, #tpu.memory_space<smem>>
    %814 = vector.extract_strided_slice %558 {offsets = [6, 0], sizes = [1, 128], strides = [1, 1]} : vector<8x128xf32> to vector<1x128xf32>
    %815 = vector.broadcast %813 : f32 to vector<1x128xf32>
    %816 = arith.mulf %815, %814 : vector<1x128xf32>
    %817 = arith.addf %812, %816 : vector<1x128xf32>
    %c57_103 = arith.constant 57 : index
    %818 = memref.load %arg0[%c57_103] : memref<148xf32, #tpu.memory_space<smem>>
    %819 = vector.extract_strided_slice %558 {offsets = [7, 0], sizes = [1, 128], strides = [1, 1]} : vector<8x128xf32> to vector<1x128xf32>
    %820 = vector.broadcast %818 : f32 to vector<1x128xf32>
    %821 = arith.mulf %820, %819 : vector<1x128xf32>
    %822 = arith.addf %817, %821 : vector<1x128xf32>
    %c49_104 = arith.constant 49 : index
    %823 = memref.load %arg0[%c49_104] : memref<148xf32, #tpu.memory_space<smem>>
    %824 = vector.extract_strided_slice %553 {offsets = [4, 0], sizes = [1, 128], strides = [1, 1]} : vector<8x128xf32> to vector<1x128xf32>
    %825 = vector.broadcast %823 : f32 to vector<1x128xf32>
    %826 = arith.mulf %825, %824 : vector<1x128xf32>
    %827 = arith.addf %822, %826 : vector<1x128xf32>
    %c52_105 = arith.constant 52 : index
    %828 = memref.load %arg0[%c52_105] : memref<148xf32, #tpu.memory_space<smem>>
    %829 = vector.extract_strided_slice %553 {offsets = [5, 0], sizes = [1, 128], strides = [1, 1]} : vector<8x128xf32> to vector<1x128xf32>
    %830 = vector.broadcast %828 : f32 to vector<1x128xf32>
    %831 = arith.mulf %830, %829 : vector<1x128xf32>
    %832 = arith.addf %827, %831 : vector<1x128xf32>
    %c55_106 = arith.constant 55 : index
    %833 = memref.load %arg0[%c55_106] : memref<148xf32, #tpu.memory_space<smem>>
    %834 = vector.extract_strided_slice %553 {offsets = [6, 0], sizes = [1, 128], strides = [1, 1]} : vector<8x128xf32> to vector<1x128xf32>
    %835 = vector.broadcast %833 : f32 to vector<1x128xf32>
    %836 = arith.mulf %835, %834 : vector<1x128xf32>
    %837 = arith.addf %832, %836 : vector<1x128xf32>
    %c58_107 = arith.constant 58 : index
    %838 = memref.load %arg0[%c58_107] : memref<148xf32, #tpu.memory_space<smem>>
    %839 = vector.extract_strided_slice %553 {offsets = [7, 0], sizes = [1, 128], strides = [1, 1]} : vector<8x128xf32> to vector<1x128xf32>
    %840 = vector.broadcast %838 : f32 to vector<1x128xf32>
    %841 = arith.mulf %840, %839 : vector<1x128xf32>
    %842 = arith.addf %837, %841 : vector<1x128xf32>
    %c50_108 = arith.constant 50 : index
    %843 = memref.load %arg0[%c50_108] : memref<148xf32, #tpu.memory_space<smem>>
    %844 = vector.extract_strided_slice %563 {offsets = [4, 0], sizes = [1, 128], strides = [1, 1]} : vector<8x128xf32> to vector<1x128xf32>
    %845 = vector.broadcast %843 : f32 to vector<1x128xf32>
    %846 = arith.mulf %845, %844 : vector<1x128xf32>
    %847 = arith.addf %842, %846 : vector<1x128xf32>
    %c53_109 = arith.constant 53 : index
    %848 = memref.load %arg0[%c53_109] : memref<148xf32, #tpu.memory_space<smem>>
    %849 = vector.extract_strided_slice %563 {offsets = [5, 0], sizes = [1, 128], strides = [1, 1]} : vector<8x128xf32> to vector<1x128xf32>
    %850 = vector.broadcast %848 : f32 to vector<1x128xf32>
    %851 = arith.mulf %850, %849 : vector<1x128xf32>
    %852 = arith.addf %847, %851 : vector<1x128xf32>
    %c56_110 = arith.constant 56 : index
    %853 = memref.load %arg0[%c56_110] : memref<148xf32, #tpu.memory_space<smem>>
    %854 = vector.extract_strided_slice %563 {offsets = [6, 0], sizes = [1, 128], strides = [1, 1]} : vector<8x128xf32> to vector<1x128xf32>
    %855 = vector.broadcast %853 : f32 to vector<1x128xf32>
    %856 = arith.mulf %855, %854 : vector<1x128xf32>
    %857 = arith.addf %852, %856 : vector<1x128xf32>
    %c59_111 = arith.constant 59 : index
    %858 = memref.load %arg0[%c59_111] : memref<148xf32, #tpu.memory_space<smem>>
    %859 = vector.extract_strided_slice %563 {offsets = [7, 0], sizes = [1, 128], strides = [1, 1]} : vector<8x128xf32> to vector<1x128xf32>
    %860 = vector.broadcast %858 : f32 to vector<1x128xf32>
    %861 = arith.mulf %860, %859 : vector<1x128xf32>
    %862 = arith.addf %857, %861 : vector<1x128xf32>
    %c4_112 = arith.constant 4 : index
    %c0_113 = arith.constant 0 : index
    %863 = vector.load %arg4[%c4_112, %c0_113] : memref<8x128xf32, #tpu.memory_space<vmem>>, vector<1x128xf32>
    tpu.vector_store %arg4[%c4_112, %c0_113], %862 {strides = array<i32>} : memref<8x128xf32, #tpu.memory_space<vmem>>, vector<1x128xf32>,
    %c60_114 = arith.constant 60 : index
    %864 = memref.load %arg0[%c60_114] : memref<148xf32, #tpu.memory_space<smem>>
    %865 = vector.extract_strided_slice %558 {offsets = [4, 0], sizes = [1, 128], strides = [1, 1]} : vector<8x128xf32> to vector<1x128xf32>
    %866 = vector.broadcast %864 : f32 to vector<1x128xf32>
    %867 = arith.mulf %866, %865 : vector<1x128xf32>
    %c63_115 = arith.constant 63 : index
    %868 = memref.load %arg0[%c63_115] : memref<148xf32, #tpu.memory_space<smem>>
    %869 = vector.extract_strided_slice %558 {offsets = [5, 0], sizes = [1, 128], strides = [1, 1]} : vector<8x128xf32> to vector<1x128xf32>
    %870 = vector.broadcast %868 : f32 to vector<1x128xf32>
    %871 = arith.mulf %870, %869 : vector<1x128xf32>
    %872 = arith.addf %867, %871 : vector<1x128xf32>
    %c66_116 = arith.constant 66 : index
    %873 = memref.load %arg0[%c66_116] : memref<148xf32, #tpu.memory_space<smem>>
    %874 = vector.extract_strided_slice %558 {offsets = [6, 0], sizes = [1, 128], strides = [1, 1]} : vector<8x128xf32> to vector<1x128xf32>
    %875 = vector.broadcast %873 : f32 to vector<1x128xf32>
    %876 = arith.mulf %875, %874 : vector<1x128xf32>
    %877 = arith.addf %872, %876 : vector<1x128xf32>
    %c69_117 = arith.constant 69 : index
    %878 = memref.load %arg0[%c69_117] : memref<148xf32, #tpu.memory_space<smem>>
    %879 = vector.extract_strided_slice %558 {offsets = [7, 0], sizes = [1, 128], strides = [1, 1]} : vector<8x128xf32> to vector<1x128xf32>
    %880 = vector.broadcast %878 : f32 to vector<1x128xf32>
    %881 = arith.mulf %880, %879 : vector<1x128xf32>
    %882 = arith.addf %877, %881 : vector<1x128xf32>
    %c61_118 = arith.constant 61 : index
    %883 = memref.load %arg0[%c61_118] : memref<148xf32, #tpu.memory_space<smem>>
    %884 = vector.extract_strided_slice %553 {offsets = [4, 0], sizes = [1, 128], strides = [1, 1]} : vector<8x128xf32> to vector<1x128xf32>
    %885 = vector.broadcast %883 : f32 to vector<1x128xf32>
    %886 = arith.mulf %885, %884 : vector<1x128xf32>
    %887 = arith.addf %882, %886 : vector<1x128xf32>
    %c64_119 = arith.constant 64 : index
    %888 = memref.load %arg0[%c64_119] : memref<148xf32, #tpu.memory_space<smem>>
    %889 = vector.extract_strided_slice %553 {offsets = [5, 0], sizes = [1, 128], strides = [1, 1]} : vector<8x128xf32> to vector<1x128xf32>
    %890 = vector.broadcast %888 : f32 to vector<1x128xf32>
    %891 = arith.mulf %890, %889 : vector<1x128xf32>
    %892 = arith.addf %887, %891 : vector<1x128xf32>
    %c67_120 = arith.constant 67 : index
    %893 = memref.load %arg0[%c67_120] : memref<148xf32, #tpu.memory_space<smem>>
    %894 = vector.extract_strided_slice %553 {offsets = [6, 0], sizes = [1, 128], strides = [1, 1]} : vector<8x128xf32> to vector<1x128xf32>
    %895 = vector.broadcast %893 : f32 to vector<1x128xf32>
    %896 = arith.mulf %895, %894 : vector<1x128xf32>
    %897 = arith.addf %892, %896 : vector<1x128xf32>
    %c70_121 = arith.constant 70 : index
    %898 = memref.load %arg0[%c70_121] : memref<148xf32, #tpu.memory_space<smem>>
    %899 = vector.extract_strided_slice %553 {offsets = [7, 0], sizes = [1, 128], strides = [1, 1]} : vector<8x128xf32> to vector<1x128xf32>
    %900 = vector.broadcast %898 : f32 to vector<1x128xf32>
    %901 = arith.mulf %900, %899 : vector<1x128xf32>
    %902 = arith.addf %897, %901 : vector<1x128xf32>
    %c62_122 = arith.constant 62 : index
    %903 = memref.load %arg0[%c62_122] : memref<148xf32, #tpu.memory_space<smem>>
    %904 = vector.extract_strided_slice %563 {offsets = [4, 0], sizes = [1, 128], strides = [1, 1]} : vector<8x128xf32> to vector<1x128xf32>
    %905 = vector.broadcast %903 : f32 to vector<1x128xf32>
    %906 = arith.mulf %905, %904 : vector<1x128xf32>
    %907 = arith.addf %902, %906 : vector<1x128xf32>
    %c65_123 = arith.constant 65 : index
    %908 = memref.load %arg0[%c65_123] : memref<148xf32, #tpu.memory_space<smem>>
    %909 = vector.extract_strided_slice %563 {offsets = [5, 0], sizes = [1, 128], strides = [1, 1]} : vector<8x128xf32> to vector<1x128xf32>
    %910 = vector.broadcast %908 : f32 to vector<1x128xf32>
    %911 = arith.mulf %910, %909 : vector<1x128xf32>
    %912 = arith.addf %907, %911 : vector<1x128xf32>
    %c68_124 = arith.constant 68 : index
    %913 = memref.load %arg0[%c68_124] : memref<148xf32, #tpu.memory_space<smem>>
    %914 = vector.extract_strided_slice %563 {offsets = [6, 0], sizes = [1, 128], strides = [1, 1]} : vector<8x128xf32> to vector<1x128xf32>
    %915 = vector.broadcast %913 : f32 to vector<1x128xf32>
    %916 = arith.mulf %915, %914 : vector<1x128xf32>
    %917 = arith.addf %912, %916 : vector<1x128xf32>
    %c71_125 = arith.constant 71 : index
    %918 = memref.load %arg0[%c71_125] : memref<148xf32, #tpu.memory_space<smem>>
    %919 = vector.extract_strided_slice %563 {offsets = [7, 0], sizes = [1, 128], strides = [1, 1]} : vector<8x128xf32> to vector<1x128xf32>
    %920 = vector.broadcast %918 : f32 to vector<1x128xf32>
    %921 = arith.mulf %920, %919 : vector<1x128xf32>
    %922 = arith.addf %917, %921 : vector<1x128xf32>
    %c5_126 = arith.constant 5 : index
    %c0_127 = arith.constant 0 : index
    %923 = vector.load %arg4[%c5_126, %c0_127] : memref<8x128xf32, #tpu.memory_space<vmem>>, vector<1x128xf32>
    tpu.vector_store %arg4[%c5_126, %c0_127], %922 {strides = array<i32>} : memref<8x128xf32, #tpu.memory_space<vmem>>, vector<1x128xf32>,
    %c72_128 = arith.constant 72 : index
    %924 = memref.load %arg0[%c72_128] : memref<148xf32, #tpu.memory_space<smem>>
    %925 = vector.extract_strided_slice %558 {offsets = [4, 0], sizes = [1, 128], strides = [1, 1]} : vector<8x128xf32> to vector<1x128xf32>
    %926 = vector.broadcast %924 : f32 to vector<1x128xf32>
    %927 = arith.mulf %926, %925 : vector<1x128xf32>
    %c75_129 = arith.constant 75 : index
    %928 = memref.load %arg0[%c75_129] : memref<148xf32, #tpu.memory_space<smem>>
    %929 = vector.extract_strided_slice %558 {offsets = [5, 0], sizes = [1, 128], strides = [1, 1]} : vector<8x128xf32> to vector<1x128xf32>
    %930 = vector.broadcast %928 : f32 to vector<1x128xf32>
    %931 = arith.mulf %930, %929 : vector<1x128xf32>
    %932 = arith.addf %927, %931 : vector<1x128xf32>
    %c78_130 = arith.constant 78 : index
    %933 = memref.load %arg0[%c78_130] : memref<148xf32, #tpu.memory_space<smem>>
    %934 = vector.extract_strided_slice %558 {offsets = [6, 0], sizes = [1, 128], strides = [1, 1]} : vector<8x128xf32> to vector<1x128xf32>
    %935 = vector.broadcast %933 : f32 to vector<1x128xf32>
    %936 = arith.mulf %935, %934 : vector<1x128xf32>
    %937 = arith.addf %932, %936 : vector<1x128xf32>
    %c81_131 = arith.constant 81 : index
    %938 = memref.load %arg0[%c81_131] : memref<148xf32, #tpu.memory_space<smem>>
    %939 = vector.extract_strided_slice %558 {offsets = [7, 0], sizes = [1, 128], strides = [1, 1]} : vector<8x128xf32> to vector<1x128xf32>
    %940 = vector.broadcast %938 : f32 to vector<1x128xf32>
    %941 = arith.mulf %940, %939 : vector<1x128xf32>
    %942 = arith.addf %937, %941 : vector<1x128xf32>
    %c73_132 = arith.constant 73 : index
    %943 = memref.load %arg0[%c73_132] : memref<148xf32, #tpu.memory_space<smem>>
    %944 = vector.extract_strided_slice %553 {offsets = [4, 0], sizes = [1, 128], strides = [1, 1]} : vector<8x128xf32> to vector<1x128xf32>
    %945 = vector.broadcast %943 : f32 to vector<1x128xf32>
    %946 = arith.mulf %945, %944 : vector<1x128xf32>
    %947 = arith.addf %942, %946 : vector<1x128xf32>
    %c76_133 = arith.constant 76 : index
    %948 = memref.load %arg0[%c76_133] : memref<148xf32, #tpu.memory_space<smem>>
    %949 = vector.extract_strided_slice %553 {offsets = [5, 0], sizes = [1, 128], strides = [1, 1]} : vector<8x128xf32> to vector<1x128xf32>
    %950 = vector.broadcast %948 : f32 to vector<1x128xf32>
    %951 = arith.mulf %950, %949 : vector<1x128xf32>
    %952 = arith.addf %947, %951 : vector<1x128xf32>
    %c79_134 = arith.constant 79 : index
    %953 = memref.load %arg0[%c79_134] : memref<148xf32, #tpu.memory_space<smem>>
    %954 = vector.extract_strided_slice %553 {offsets = [6, 0], sizes = [1, 128], strides = [1, 1]} : vector<8x128xf32> to vector<1x128xf32>
    %955 = vector.broadcast %953 : f32 to vector<1x128xf32>
    %956 = arith.mulf %955, %954 : vector<1x128xf32>
    %957 = arith.addf %952, %956 : vector<1x128xf32>
    %c82_135 = arith.constant 82 : index
    %958 = memref.load %arg0[%c82_135] : memref<148xf32, #tpu.memory_space<smem>>
    %959 = vector.extract_strided_slice %553 {offsets = [7, 0], sizes = [1, 128], strides = [1, 1]} : vector<8x128xf32> to vector<1x128xf32>
    %960 = vector.broadcast %958 : f32 to vector<1x128xf32>
    %961 = arith.mulf %960, %959 : vector<1x128xf32>
    %962 = arith.addf %957, %961 : vector<1x128xf32>
    %c74_136 = arith.constant 74 : index
    %963 = memref.load %arg0[%c74_136] : memref<148xf32, #tpu.memory_space<smem>>
    %964 = vector.extract_strided_slice %563 {offsets = [4, 0], sizes = [1, 128], strides = [1, 1]} : vector<8x128xf32> to vector<1x128xf32>
    %965 = vector.broadcast %963 : f32 to vector<1x128xf32>
    %966 = arith.mulf %965, %964 : vector<1x128xf32>
    %967 = arith.addf %962, %966 : vector<1x128xf32>
    %c77_137 = arith.constant 77 : index
    %968 = memref.load %arg0[%c77_137] : memref<148xf32, #tpu.memory_space<smem>>
    %969 = vector.extract_strided_slice %563 {offsets = [5, 0], sizes = [1, 128], strides = [1, 1]} : vector<8x128xf32> to vector<1x128xf32>
    %970 = vector.broadcast %968 : f32 to vector<1x128xf32>
    %971 = arith.mulf %970, %969 : vector<1x128xf32>
    %972 = arith.addf %967, %971 : vector<1x128xf32>
    %c80_138 = arith.constant 80 : index
    %973 = memref.load %arg0[%c80_138] : memref<148xf32, #tpu.memory_space<smem>>
    %974 = vector.extract_strided_slice %563 {offsets = [6, 0], sizes = [1, 128], strides = [1, 1]} : vector<8x128xf32> to vector<1x128xf32>
    %975 = vector.broadcast %973 : f32 to vector<1x128xf32>
    %976 = arith.mulf %975, %974 : vector<1x128xf32>
    %977 = arith.addf %972, %976 : vector<1x128xf32>
    %c83_139 = arith.constant 83 : index
    %978 = memref.load %arg0[%c83_139] : memref<148xf32, #tpu.memory_space<smem>>
    %979 = vector.extract_strided_slice %563 {offsets = [7, 0], sizes = [1, 128], strides = [1, 1]} : vector<8x128xf32> to vector<1x128xf32>
    %980 = vector.broadcast %978 : f32 to vector<1x128xf32>
    %981 = arith.mulf %980, %979 : vector<1x128xf32>
    %982 = arith.addf %977, %981 : vector<1x128xf32>
    %c6_140 = arith.constant 6 : index
    %c0_141 = arith.constant 0 : index
    %983 = vector.load %arg4[%c6_140, %c0_141] : memref<8x128xf32, #tpu.memory_space<vmem>>, vector<1x128xf32>
    tpu.vector_store %arg4[%c6_140, %c0_141], %982 {strides = array<i32>} : memref<8x128xf32, #tpu.memory_space<vmem>>, vector<1x128xf32>,
    %c84_142 = arith.constant 84 : index
    %984 = memref.load %arg0[%c84_142] : memref<148xf32, #tpu.memory_space<smem>>
    %985 = vector.extract_strided_slice %558 {offsets = [4, 0], sizes = [1, 128], strides = [1, 1]} : vector<8x128xf32> to vector<1x128xf32>
    %986 = vector.broadcast %984 : f32 to vector<1x128xf32>
    %987 = arith.mulf %986, %985 : vector<1x128xf32>
    %c87_143 = arith.constant 87 : index
    %988 = memref.load %arg0[%c87_143] : memref<148xf32, #tpu.memory_space<smem>>
    %989 = vector.extract_strided_slice %558 {offsets = [5, 0], sizes = [1, 128], strides = [1, 1]} : vector<8x128xf32> to vector<1x128xf32>
    %990 = vector.broadcast %988 : f32 to vector<1x128xf32>
    %991 = arith.mulf %990, %989 : vector<1x128xf32>
    %992 = arith.addf %987, %991 : vector<1x128xf32>
    %c90_144 = arith.constant 90 : index
    %993 = memref.load %arg0[%c90_144] : memref<148xf32, #tpu.memory_space<smem>>
    %994 = vector.extract_strided_slice %558 {offsets = [6, 0], sizes = [1, 128], strides = [1, 1]} : vector<8x128xf32> to vector<1x128xf32>
    %995 = vector.broadcast %993 : f32 to vector<1x128xf32>
    %996 = arith.mulf %995, %994 : vector<1x128xf32>
    %997 = arith.addf %992, %996 : vector<1x128xf32>
    %c93_145 = arith.constant 93 : index
    %998 = memref.load %arg0[%c93_145] : memref<148xf32, #tpu.memory_space<smem>>
    %999 = vector.extract_strided_slice %558 {offsets = [7, 0], sizes = [1, 128], strides = [1, 1]} : vector<8x128xf32> to vector<1x128xf32>
    %1000 = vector.broadcast %998 : f32 to vector<1x128xf32>
    %1001 = arith.mulf %1000, %999 : vector<1x128xf32>
    %1002 = arith.addf %997, %1001 : vector<1x128xf32>
    %c85_146 = arith.constant 85 : index
    %1003 = memref.load %arg0[%c85_146] : memref<148xf32, #tpu.memory_space<smem>>
    %1004 = vector.extract_strided_slice %553 {offsets = [4, 0], sizes = [1, 128], strides = [1, 1]} : vector<8x128xf32> to vector<1x128xf32>
    %1005 = vector.broadcast %1003 : f32 to vector<1x128xf32>
    %1006 = arith.mulf %1005, %1004 : vector<1x128xf32>
    %1007 = arith.addf %1002, %1006 : vector<1x128xf32>
    %c88_147 = arith.constant 88 : index
    %1008 = memref.load %arg0[%c88_147] : memref<148xf32, #tpu.memory_space<smem>>
    %1009 = vector.extract_strided_slice %553 {offsets = [5, 0], sizes = [1, 128], strides = [1, 1]} : vector<8x128xf32> to vector<1x128xf32>
    %1010 = vector.broadcast %1008 : f32 to vector<1x128xf32>
    %1011 = arith.mulf %1010, %1009 : vector<1x128xf32>
    %1012 = arith.addf %1007, %1011 : vector<1x128xf32>
    %c91_148 = arith.constant 91 : index
    %1013 = memref.load %arg0[%c91_148] : memref<148xf32, #tpu.memory_space<smem>>
    %1014 = vector.extract_strided_slice %553 {offsets = [6, 0], sizes = [1, 128], strides = [1, 1]} : vector<8x128xf32> to vector<1x128xf32>
    %1015 = vector.broadcast %1013 : f32 to vector<1x128xf32>
    %1016 = arith.mulf %1015, %1014 : vector<1x128xf32>
    %1017 = arith.addf %1012, %1016 : vector<1x128xf32>
    %c94_149 = arith.constant 94 : index
    %1018 = memref.load %arg0[%c94_149] : memref<148xf32, #tpu.memory_space<smem>>
    %1019 = vector.extract_strided_slice %553 {offsets = [7, 0], sizes = [1, 128], strides = [1, 1]} : vector<8x128xf32> to vector<1x128xf32>
    %1020 = vector.broadcast %1018 : f32 to vector<1x128xf32>
    %1021 = arith.mulf %1020, %1019 : vector<1x128xf32>
    %1022 = arith.addf %1017, %1021 : vector<1x128xf32>
    %c86_150 = arith.constant 86 : index
    %1023 = memref.load %arg0[%c86_150] : memref<148xf32, #tpu.memory_space<smem>>
    %1024 = vector.extract_strided_slice %563 {offsets = [4, 0], sizes = [1, 128], strides = [1, 1]} : vector<8x128xf32> to vector<1x128xf32>
    %1025 = vector.broadcast %1023 : f32 to vector<1x128xf32>
    %1026 = arith.mulf %1025, %1024 : vector<1x128xf32>
    %1027 = arith.addf %1022, %1026 : vector<1x128xf32>
    %c89_151 = arith.constant 89 : index
    %1028 = memref.load %arg0[%c89_151] : memref<148xf32, #tpu.memory_space<smem>>
    %1029 = vector.extract_strided_slice %563 {offsets = [5, 0], sizes = [1, 128], strides = [1, 1]} : vector<8x128xf32> to vector<1x128xf32>
    %1030 = vector.broadcast %1028 : f32 to vector<1x128xf32>
    %1031 = arith.mulf %1030, %1029 : vector<1x128xf32>
    %1032 = arith.addf %1027, %1031 : vector<1x128xf32>
    %c92_152 = arith.constant 92 : index
    %1033 = memref.load %arg0[%c92_152] : memref<148xf32, #tpu.memory_space<smem>>
    %1034 = vector.extract_strided_slice %563 {offsets = [6, 0], sizes = [1, 128], strides = [1, 1]} : vector<8x128xf32> to vector<1x128xf32>
    %1035 = vector.broadcast %1033 : f32 to vector<1x128xf32>
    %1036 = arith.mulf %1035, %1034 : vector<1x128xf32>
    %1037 = arith.addf %1032, %1036 : vector<1x128xf32>
    %c95_153 = arith.constant 95 : index
    %1038 = memref.load %arg0[%c95_153] : memref<148xf32, #tpu.memory_space<smem>>
    %1039 = vector.extract_strided_slice %563 {offsets = [7, 0], sizes = [1, 128], strides = [1, 1]} : vector<8x128xf32> to vector<1x128xf32>
    %1040 = vector.broadcast %1038 : f32 to vector<1x128xf32>
    %1041 = arith.mulf %1040, %1039 : vector<1x128xf32>
    %1042 = arith.addf %1037, %1041 : vector<1x128xf32>
    %c7_154 = arith.constant 7 : index
    %c0_155 = arith.constant 0 : index
    %1043 = vector.load %arg4[%c7_154, %c0_155] : memref<8x128xf32, #tpu.memory_space<vmem>>, vector<1x128xf32>
    tpu.vector_store %arg4[%c7_154, %c0_155], %1042 {strides = array<i32>} : memref<8x128xf32, #tpu.memory_space<vmem>>, vector<1x128xf32>,
    %c0_156 = arith.constant 0 : index
    %c0_157 = arith.constant 0 : index
    %1044 = vector.load %arg4[%c0_156, %c0_157] : memref<8x128xf32, #tpu.memory_space<vmem>>, vector<8x128xf32>
    %c2_158 = arith.constant 2 : index
    %c0_159 = arith.constant 0 : index
    %c0_160 = arith.constant 0 : index
    %1045 = vector.load %arg1[%c2_158, %c0_159, %c0_160] : memref<6x8x1xf32, #tpu.memory_space<vmem>>, vector<1x8x1xf32>
    %1046 = vector.shape_cast %1045 : vector<1x8x1xf32> to vector<8x1xf32>
    %c3_161 = arith.constant 3 : index
    %c0_162 = arith.constant 0 : index
    %c0_163 = arith.constant 0 : index
    %1047 = vector.load %arg1[%c3_161, %c0_162, %c0_163] : memref<6x8x1xf32, #tpu.memory_space<vmem>>, vector<1x8x1xf32>
    %1048 = vector.shape_cast %1047 : vector<1x8x1xf32> to vector<8x1xf32>
    %cst_164 = arith.constant dense<0.000000e+00> : vector<8xf32>
    %1049 = vector.multi_reduction <add>, %1044, %cst_164 [1] : vector<8x128xf32> to vector<8xf32>
    %1050 = vector.shape_cast %1049 : vector<8xf32> to vector<8x1xf32>
    %1051 = arith.mulf %1044, %1044 : vector<8x128xf32>
    %cst_165 = arith.constant dense<0.000000e+00> : vector<8xf32>
    %1052 = vector.multi_reduction <add>, %1051, %cst_165 [1] : vector<8x128xf32> to vector<8xf32>
    %1053 = vector.shape_cast %1052 : vector<8xf32> to vector<8x1xf32>
    %c4_i32_166 = arith.constant 4 : i32
    %1054 = tpu.dynamic_rotate %1050 by %c4_i32_166 dim 0 : vector<8x1xf32>, i32 -> vector<8x1xf32>
    %1055 = arith.addf %1050, %1054 : vector<8x1xf32>
    %cst_167 = arith.constant 3.906250e-03 : f32
    %1056 = vector.broadcast %cst_167 : f32 to vector<8x1xf32>
    %1057 = arith.mulf %1055, %1056 : vector<8x1xf32>
    %c4_i32_168 = arith.constant 4 : i32
    %1058 = tpu.dynamic_rotate %1053 by %c4_i32_168 dim 0 : vector<8x1xf32>, i32 -> vector<8x1xf32>
    %1059 = arith.addf %1053, %1058 : vector<8x1xf32>
    %cst_169 = arith.constant 3.906250e-03 : f32
    %1060 = vector.broadcast %cst_169 : f32 to vector<8x1xf32>
    %1061 = arith.mulf %1059, %1060 : vector<8x1xf32>
    %1062 = arith.mulf %1057, %1057 : vector<8x1xf32>
    %1063 = arith.subf %1061, %1062 : vector<8x1xf32>
    %cst_170 = arith.constant 0.000000e+00 : f32
    %1064 = vector.broadcast %cst_170 : f32 to vector<8x1xf32>
    %1065 = arith.maximumf %1063, %1064 : vector<8x1xf32>
    %cst_171 = arith.constant 9.99999974E-6 : f32
    %1066 = vector.broadcast %cst_171 : f32 to vector<8x1xf32>
    %1067 = arith.addf %1065, %1066 : vector<8x1xf32>
    %1068 = math.rsqrt %1067 : vector<8x1xf32>
    %1069 = arith.mulf %1046, %1068 : vector<8x1xf32>
    %1070 = arith.mulf %1057, %1069 : vector<8x1xf32>
    %1071 = arith.subf %1048, %1070 : vector<8x1xf32>
    %1072 = vector.broadcast %1069 : vector<8x1xf32> to vector<8x128xf32>
    %1073 = arith.mulf %1044, %1072 : vector<8x128xf32>
    %1074 = vector.broadcast %1071 : vector<8x1xf32> to vector<8x128xf32>
    %1075 = arith.addf %1073, %1074 : vector<8x128xf32>
    %1076 = arith.addf %5, %1075 : vector<8x128xf32>
    %c0_172 = arith.constant 0 : index
    %c0_173 = arith.constant 0 : index
    %1077 = vector.load %arg3[%c0_172, %c0_173] : memref<8x128xf32, #tpu.memory_space<vmem>>, vector<8x128xf32>
    tpu.vector_store %arg3[%c0_172, %c0_173], %1076 {strides = array<i32>} : memref<8x128xf32, #tpu.memory_space<vmem>>, vector<8x128xf32>,
    return
  }
}

</mosaic_0001>

<llo_original>
// kernel: tpu_custom_call.1
$region0: #{tpu_custom_call.1}
  #allocation0 [shape = 'u32[]', space=smem, size = 0x4, offset = 0x4, fixed_abs, tag = 'smem constant byte address 0x4 - core index']
  #allocation1 [shape = 'u32[144,128]{1,0:T(1,128)}', space=vmem, size = 0x12000, scoped, tag = 'internal scratch']
  #allocation2 [shape = 'f32[8,128]{1,0:T(8,128)}', space=vmem, size = 0x1000, scoped, tag = 'scratch operand']
  %s0 = inlined_call_operand.vmem [shape: f32[148], index: 0, kind: input, shape index: {}]
  %s1 = inlined_call_operand.vmem [shape: f32[6,8,1], index: 1, kind: input, shape index: {}]
  %s2 = inlined_call_operand.vmem [shape: f32[8,128], index: 2, kind: input, shape index: {}]
  %s3 = inlined_call_operand.hbm [shape: f32[8,128], index: 3, kind: output, shape index: {}]
  %s4 = sld [smem:[#allocation0]]
  $region26: #{tpu_custom_call.1} parent=0
    _
  %s6 = ssub.s32 1, %s4
  %s7 = scalar_select 0, %s6, %s4
  $region1: #{tpu_custom_call.1} parent=0
    #allocation3 [shape = 'u8[1024]{0}', space=smem, size = 0x400, scoped, tag = 'input window, operand 0, single buffered']
    #allocation4 [shape = 's32[1]{0}', space=sflag, size = 0x4, scoped, tag = 'scoped memory for tpu_custom_call.1']
    #allocation5 [shape = 's32[1]{0}', space=sflag, size = 0x4, scoped, tag = 'scoped memory for tpu_custom_call.1']
    #allocation6 [shape = 'u8[4096]{0}', space=vmem, size = 0x1000, scoped, tag = 'output window, operand 0, single buffered']
    %8 = vsyncpa [#allocation5], 0
    %9 = vsyncpa [#allocation4], 0
    // Predicated region
    $region2: #{tpu_custom_call.1} parent=1 // pred_check
      _
    $region3: #{tpu_custom_call.1} parent=1 // pred_check_branch
      %11 = sbr.rel (0) target = $region5
    $region4: #{tpu_custom_call.1} parent=1 // pred_region
      %s13 = ssub.s32 32, 32
      %14 = vsyncadd [#allocation5], %s13
      %s16 = sshll.u32 %s0, 4
      %s17 = int_to_ptr.vmem [resolvable:$true] %s16
      %19 = dma.vmem_to_smem %s17, 32, [#allocation3], [#allocation5]
    $region5: #{tpu_custom_call.1} parent=1 // pred_fallthru
      _
    // Predicated region
    $region6: #{tpu_custom_call.1} parent=1 // pred_check
      _
    $region7: #{tpu_custom_call.1} parent=1 // pred_check_branch
      %21 = sbr.rel (0) target = $region9
    $region8: #{tpu_custom_call.1} parent=1 // pred_region
      _
    $region9: #{tpu_custom_call.1} parent=1 // pred_fallthru
      _
    // Predicated region
    $region10: #{tpu_custom_call.1} parent=1 // pred_check
      _
    $region11: #{tpu_custom_call.1} parent=1 // pred_check_branch
      %23 = sbr.rel (0) target = $region13
    $region12: #{tpu_custom_call.1} parent=1 // pred_region
      _
    $region13: #{tpu_custom_call.1} parent=1 // pred_fallthru
      _
    // Predicated region
    $region14: #{tpu_custom_call.1} parent=1 // pred_check
      _
    $region15: #{tpu_custom_call.1} parent=1 // pred_check_branch
      %25 = sbr.rel (0) target = $region17
    $region16: #{tpu_custom_call.1} parent=1 // pred_region
      %26 = dma.done [#allocation5], 32
    $region17: #{tpu_custom_call.1} parent=1 // pred_fallthru
      _
    %27 = sfence
    %v28 = vlaneseq
    %v29 = vand.u32 %v28, 127
    %vm30 = vcmp.gt.s32.totalorder %v29, 0
    %vm31 = vcmp.lt.s32.totalorder %v29, 127
    %v32 = vld [vmem:[%s2] sm:$0xff]
    %33 = vrot.lane.b32.xlu0 %v32, 1
    %v34 = vpop.permute.xlu0 %33
    %v35 = vsel %vm30, 1, 0
    %vm36 = vcmp.eq.s32.totalorder %v35, 1
    %v37 = vsel %vm36, %v34, 0.0
    %38 = vrot.lane.b32.xlu0 %v32, 127
    %v39 = vpop.permute.xlu0 %38
    %v40 = vsel %vm31, 1, 0
    %vm41 = vcmp.eq.s32.totalorder %v40, 1
    %v42 = vsel %vm41, %v39, 0.0
    %s43 = sld [smem:[#allocation3]]
    %v44 = vstv %s43
    %v45 = vmul.f32 %v44, %v37
    %s46 = sld [smem:[#allocation3 + $0x3]]
    %v47 = vstv %s46
    %v48 = vmul.f32 %v47, %v37
    %v50 = vrot.slane %v48, 1
    %v52 = vadd.f32 %v45, %v50
    %s53 = sld [smem:[#allocation3 + $0x6]]
    %v54 = vstv %s53
    %v55 = vmul.f32 %v54, %v37
    %v57 = vrot.slane %v55, 2
    %v59 = vadd.f32 %v52, %v57
    %s60 = sld [smem:[#allocation3 + $0x9]]
    %v61 = vstv %s60
    %v62 = vmul.f32 %v61, %v37
    %v64 = vrot.slane %v62, 3
    %v66 = vadd.f32 %v59, %v64
    %s67 = sld [smem:[#allocation3 + $0x1]]
    %v68 = vstv %s67
    %v69 = vmul.f32 %v68, %v32
    %v70 = vadd.f32 %v66, %v69
    %s71 = sld [smem:[#allocation3 + $0x4]]
    %v72 = vstv %s71
    %v73 = vmul.f32 %v72, %v32
    %v75 = vrot.slane %v73, 1
    %v77 = vadd.f32 %v70, %v75
    %s78 = sld [smem:[#allocation3 + $0x7]]
    %v79 = vstv %s78
    %v80 = vmul.f32 %v79, %v32
    %v82 = vrot.slane %v80, 2
    %v84 = vadd.f32 %v77, %v82
    %s85 = sld [smem:[#allocation3 + $0xa]]
    %v86 = vstv %s85
    %v87 = vmul.f32 %v86, %v32
    %v89 = vrot.slane %v87, 3
    %v91 = vadd.f32 %v84, %v89
    %s92 = sld [smem:[#allocation3 + $0x2]]
    %v93 = vstv %s92
    %v94 = vmul.f32 %v93, %v42
    %v95 = vadd.f32 %v91, %v94
    %s96 = sld [smem:[#allocation3 + $0x5]]
    %v97 = vstv %s96
    %v98 = vmul.f32 %v97, %v42
    %v100 = vrot.slane %v98, 1
    %v102 = vadd.f32 %v95, %v100
    %s103 = sld [smem:[#allocation3 + $0x8]]
    %v104 = vstv %s103
    %v105 = vmul.f32 %v104, %v42
    %v107 = vrot.slane %v105, 2
    %v109 = vadd.f32 %v102, %v107
    %s110 = sld [smem:[#allocation3 + $0xb]]
    %v111 = vstv %s110
    %v112 = vmul.f32 %v111, %v42
    %v114 = vrot.slane %v112, 3
    %v116 = vadd.f32 %v109, %v114
    %s117 = sld [smem:[#allocation3 + $0x90]]
    %v118 = vstv %s117
    %v119 = vadd.f32 %v116, %v118
    %120 = vst [vmem:[#allocation2] sm:$0x1] %v119
    %s121 = sld [smem:[#allocation3 + $0xc]]
    %v122 = vstv %s121
    %v123 = vmul.f32 %v122, %v37
    %s124 = sld [smem:[#allocation3 + $0xf]]
    %v125 = vstv %s124
    %v126 = vmul.f32 %v125, %v37
    %v128 = vrot.slane %v126, 1
    %v130 = vadd.f32 %v123, %v128
    %s131 = sld [smem:[#allocation3 + $0x12]]
    %v132 = vstv %s131
    %v133 = vmul.f32 %v132, %v37
    %v135 = vrot.slane %v133, 2
    %v137 = vadd.f32 %v130, %v135
    %s138 = sld [smem:[#allocation3 + $0x15]]
    %v139 = vstv %s138
    %v140 = vmul.f32 %v139, %v37
    %v142 = vrot.slane %v140, 3
    %v144 = vadd.f32 %v137, %v142
    %s145 = sld [smem:[#allocation3 + $0xd]]
    %v146 = vstv %s145
    %v147 = vmul.f32 %v146, %v32
    %v148 = vadd.f32 %v144, %v147
    %s149 = sld [smem:[#allocation3 + $0x10]]
    %v150 = vstv %s149
    %v151 = vmul.f32 %v150, %v32
    %v153 = vrot.slane %v151, 1
    %v155 = vadd.f32 %v148, %v153
    %s156 = sld [smem:[#allocation3 + $0x13]]
    %v157 = vstv %s156
    %v158 = vmul.f32 %v157, %v32
    %v160 = vrot.slane %v158, 2
    %v162 = vadd.f32 %v155, %v160
    %s163 = sld [smem:[#allocation3 + $0x16]]
    %v164 = vstv %s163
    %v165 = vmul.f32 %v164, %v32
    %v167 = vrot.slane %v165, 3
    %v169 = vadd.f32 %v162, %v167
    %s170 = sld [smem:[#allocation3 + $0xe]]
    %v171 = vstv %s170
    %v172 = vmul.f32 %v171, %v42
    %v173 = vadd.f32 %v169, %v172
    %s174 = sld [smem:[#allocation3 + $0x11]]
    %v175 = vstv %s174
    %v176 = vmul.f32 %v175, %v42
    %v178 = vrot.slane %v176, 1
    %v180 = vadd.f32 %v173, %v178
    %s181 = sld [smem:[#allocation3 + $0x14]]
    %v182 = vstv %s181
    %v183 = vmul.f32 %v182, %v42
    %v185 = vrot.slane %v183, 2
    %v187 = vadd.f32 %v180, %v185
    %s188 = sld [smem:[#allocation3 + $0x17]]
    %v189 = vstv %s188
    %v190 = vmul.f32 %v189, %v42
    %v192 = vrot.slane %v190, 3
    %v194 = vadd.f32 %v187, %v192
    %s195 = sld [smem:[#allocation3 + $0x91]]
    %v196 = vstv %s195
    %v197 = vadd.f32 %v194, %v196
    %198 = vst [vmem:[#allocation2 + $0x1] sm:$0x1] %v197
    %s199 = sld [smem:[#allocation3 + $0x18]]
    %v200 = vstv %s199
    %v201 = vmul.f32 %v200, %v37
    %s202 = sld [smem:[#allocation3 + $0x1b]]
    %v203 = vstv %s202
    %v204 = vmul.f32 %v203, %v37
    %v206 = vrot.slane %v204, 1
    %v208 = vadd.f32 %v201, %v206
    %s209 = sld [smem:[#allocation3 + $0x1e]]
    %v210 = vstv %s209
    %v211 = vmul.f32 %v210, %v37
    %v213 = vrot.slane %v211, 2
    %v215 = vadd.f32 %v208, %v213
    %s216 = sld [smem:[#allocation3 + $0x21]]
    %v217 = vstv %s216
    %v218 = vmul.f32 %v217, %v37
    %v220 = vrot.slane %v218, 3
    %v222 = vadd.f32 %v215, %v220
    %s223 = sld [smem:[#allocation3 + $0x19]]
    %v224 = vstv %s223
    %v225 = vmul.f32 %v224, %v32
    %v226 = vadd.f32 %v222, %v225
    %s227 = sld [smem:[#allocation3 + $0x1c]]
    %v228 = vstv %s227
    %v229 = vmul.f32 %v228, %v32
    %v231 = vrot.slane %v229, 1
    %v233 = vadd.f32 %v226, %v231
    %s234 = sld [smem:[#allocation3 + $0x1f]]
    %v235 = vstv %s234
    %v236 = vmul.f32 %v235, %v32
    %v238 = vrot.slane %v236, 2
    %v240 = vadd.f32 %v233, %v238
    %s241 = sld [smem:[#allocation3 + $0x22]]
    %v242 = vstv %s241
    %v243 = vmul.f32 %v242, %v32
    %v245 = vrot.slane %v243, 3
    %v247 = vadd.f32 %v240, %v245
    %s248 = sld [smem:[#allocation3 + $0x1a]]
    %v249 = vstv %s248
    %v250 = vmul.f32 %v249, %v42
    %v251 = vadd.f32 %v247, %v250
    %s252 = sld [smem:[#allocation3 + $0x1d]]
    %v253 = vstv %s252
    %v254 = vmul.f32 %v253, %v42
    %v256 = vrot.slane %v254, 1
    %v258 = vadd.f32 %v251, %v256
    %s259 = sld [smem:[#allocation3 + $0x20]]
    %v260 = vstv %s259
    %v261 = vmul.f32 %v260, %v42
    %v263 = vrot.slane %v261, 2
    %v265 = vadd.f32 %v258, %v263
    %s266 = sld [smem:[#allocation3 + $0x23]]
    %v267 = vstv %s266
    %v268 = vmul.f32 %v267, %v42
    %v270 = vrot.slane %v268, 3
    %v272 = vadd.f32 %v265, %v270
    %s273 = sld [smem:[#allocation3 + $0x92]]
    %v274 = vstv %s273
    %v275 = vadd.f32 %v272, %v274
    %276 = vst [vmem:[#allocation2 + $0x2] sm:$0x1] %v275
    %s277 = sld [smem:[#allocation3 + $0x24]]
    %v278 = vstv %s277
    %v279 = vmul.f32 %v278, %v37
    %s280 = sld [smem:[#allocation3 + $0x27]]
    %v281 = vstv %s280
    %v282 = vmul.f32 %v281, %v37
    %v284 = vrot.slane %v282, 1
    %v286 = vadd.f32 %v279, %v284
    %s287 = sld [smem:[#allocation3 + $0x2a]]
    %v288 = vstv %s287
    %v289 = vmul.f32 %v288, %v37
    %v291 = vrot.slane %v289, 2
    %v293 = vadd.f32 %v286, %v291
    %s294 = sld [smem:[#allocation3 + $0x2d]]
    %v295 = vstv %s294
    %v296 = vmul.f32 %v295, %v37
    %v298 = vrot.slane %v296, 3
    %v300 = vadd.f32 %v293, %v298
    %s301 = sld [smem:[#allocation3 + $0x25]]
    %v302 = vstv %s301
    %v303 = vmul.f32 %v302, %v32
    %v304 = vadd.f32 %v300, %v303
    %s305 = sld [smem:[#allocation3 + $0x28]]
    %v306 = vstv %s305
    %v307 = vmul.f32 %v306, %v32
    %v309 = vrot.slane %v307, 1
    %v311 = vadd.f32 %v304, %v309
    %s312 = sld [smem:[#allocation3 + $0x2b]]
    %v313 = vstv %s312
    %v314 = vmul.f32 %v313, %v32
    %v316 = vrot.slane %v314, 2
    %v318 = vadd.f32 %v311, %v316
    %s319 = sld [smem:[#allocation3 + $0x2e]]
    %v320 = vstv %s319
    %v321 = vmul.f32 %v320, %v32
    %v323 = vrot.slane %v321, 3
    %v325 = vadd.f32 %v318, %v323
    %s326 = sld [smem:[#allocation3 + $0x26]]
    %v327 = vstv %s326
    %v328 = vmul.f32 %v327, %v42
    %v329 = vadd.f32 %v325, %v328
    %s330 = sld [smem:[#allocation3 + $0x29]]
    %v331 = vstv %s330
    %v332 = vmul.f32 %v331, %v42
    %v334 = vrot.slane %v332, 1
    %v336 = vadd.f32 %v329, %v334
    %s337 = sld [smem:[#allocation3 + $0x2c]]
    %v338 = vstv %s337
    %v339 = vmul.f32 %v338, %v42
    %v341 = vrot.slane %v339, 2
    %v343 = vadd.f32 %v336, %v341
    %s344 = sld [smem:[#allocation3 + $0x2f]]
    %v345 = vstv %s344
    %v346 = vmul.f32 %v345, %v42
    %v348 = vrot.slane %v346, 3
    %v350 = vadd.f32 %v343, %v348
    %s351 = sld [smem:[#allocation3 + $0x93]]
    %v352 = vstv %s351
    %v353 = vadd.f32 %v350, %v352
    %354 = vst [vmem:[#allocation2 + $0x3] sm:$0x1] %v353
    %s355 = sld [smem:[#allocation3]]
    %v356 = vstv %s355
    %v357 = vmul.f32 %v356, %v37
    %s358 = sld [smem:[#allocation3 + $0x3]]
    %v359 = vstv %s358
    %v360 = vmul.f32 %v359, %v37
    %v362 = vrot.slane %v360, 1
    %v364 = vadd.f32 %v357, %v362
    %s365 = sld [smem:[#allocation3 + $0x6]]
    %v366 = vstv %s365
    %v367 = vmul.f32 %v366, %v37
    %v369 = vrot.slane %v367, 2
    %v371 = vadd.f32 %v364, %v369
    %s372 = sld [smem:[#allocation3 + $0x9]]
    %v373 = vstv %s372
    %v374 = vmul.f32 %v373, %v37
    %v376 = vrot.slane %v374, 3
    %v378 = vadd.f32 %v371, %v376
    %s379 = sld [smem:[#allocation3 + $0x1]]
    %v380 = vstv %s379
    %v381 = vmul.f32 %v380, %v32
    %v382 = vadd.f32 %v378, %v381
    %s383 = sld [smem:[#allocation3 + $0x4]]
    %v384 = vstv %s383
    %v385 = vmul.f32 %v384, %v32
    %v387 = vrot.slane %v385, 1
    %v389 = vadd.f32 %v382, %v387
    %s390 = sld [smem:[#allocation3 + $0x7]]
    %v391 = vstv %s390
    %v392 = vmul.f32 %v391, %v32
    %v394 = vrot.slane %v392, 2
    %v396 = vadd.f32 %v389, %v394
    %s397 = sld [smem:[#allocation3 + $0xa]]
    %v398 = vstv %s397
    %v399 = vmul.f32 %v398, %v32
    %v401 = vrot.slane %v399, 3
    %v403 = vadd.f32 %v396, %v401
    %s404 = sld [smem:[#allocation3 + $0x2]]
    %v405 = vstv %s404
    %v406 = vmul.f32 %v405, %v42
    %v407 = vadd.f32 %v403, %v406
    %s408 = sld [smem:[#allocation3 + $0x5]]
    %v409 = vstv %s408
    %v410 = vmul.f32 %v409, %v42
    %v412 = vrot.slane %v410, 1
    %v414 = vadd.f32 %v407, %v412
    %s415 = sld [smem:[#allocation3 + $0x8]]
    %v416 = vstv %s415
    %v417 = vmul.f32 %v416, %v42
    %v419 = vrot.slane %v417, 2
    %v421 = vadd.f32 %v414, %v419
    %s422 = sld [smem:[#allocation3 + $0xb]]
    %v423 = vstv %s422
    %v424 = vmul.f32 %v423, %v42
    %v426 = vrot.slane %v424, 3
    %v428 = vadd.f32 %v421, %v426
    %s429 = sld [smem:[#allocation3 + $0x90]]
    %v430 = vstv %s429
    %v431 = vadd.f32 %v428, %v430
    %432 = vst [vmem:[#allocation2] sm:$0x10] %v431
    %s433 = sld [smem:[#allocation3 + $0xc]]
    %v434 = vstv %s433
    %v435 = vmul.f32 %v434, %v37
    %s436 = sld [smem:[#allocation3 + $0xf]]
    %v437 = vstv %s436
    %v438 = vmul.f32 %v437, %v37
    %v440 = vrot.slane %v438, 1
    %v442 = vadd.f32 %v435, %v440
    %s443 = sld [smem:[#allocation3 + $0x12]]
    %v444 = vstv %s443
    %v445 = vmul.f32 %v444, %v37
    %v447 = vrot.slane %v445, 2
    %v449 = vadd.f32 %v442, %v447
    %s450 = sld [smem:[#allocation3 + $0x15]]
    %v451 = vstv %s450
    %v452 = vmul.f32 %v451, %v37
    %v454 = vrot.slane %v452, 3
    %v456 = vadd.f32 %v449, %v454
    %s457 = sld [smem:[#allocation3 + $0xd]]
    %v458 = vstv %s457
    %v459 = vmul.f32 %v458, %v32
    %v460 = vadd.f32 %v456, %v459
    %s461 = sld [smem:[#allocation3 + $0x10]]
    %v462 = vstv %s461
    %v463 = vmul.f32 %v462, %v32
    %v465 = vrot.slane %v463, 1
    %v467 = vadd.f32 %v460, %v465
    %s468 = sld [smem:[#allocation3 + $0x13]]
    %v469 = vstv %s468
    %v470 = vmul.f32 %v469, %v32
    %v472 = vrot.slane %v470, 2
    %v474 = vadd.f32 %v467, %v472
    %s475 = sld [smem:[#allocation3 + $0x16]]
    %v476 = vstv %s475
    %v477 = vmul.f32 %v476, %v32
    %v479 = vrot.slane %v477, 3
    %v481 = vadd.f32 %v474, %v479
    %s482 = sld [smem:[#allocation3 + $0xe]]
    %v483 = vstv %s482
    %v484 = vmul.f32 %v483, %v42
    %v485 = vadd.f32 %v481, %v484
    %s486 = sld [smem:[#allocation3 + $0x11]]
    %v487 = vstv %s486
    %v488 = vmul.f32 %v487, %v42
    %v490 = vrot.slane %v488, 1
    %v492 = vadd.f32 %v485, %v490
    %s493 = sld [smem:[#allocation3 + $0x14]]
    %v494 = vstv %s493
    %v495 = vmul.f32 %v494, %v42
    %v497 = vrot.slane %v495, 2
    %v499 = vadd.f32 %v492, %v497
    %s500 = sld [smem:[#allocation3 + $0x17]]
    %v501 = vstv %s500
    %v502 = vmul.f32 %v501, %v42
    %v504 = vrot.slane %v502, 3
    %v506 = vadd.f32 %v499, %v504
    %s507 = sld [smem:[#allocation3 + $0x91]]
    %v508 = vstv %s507
    %v509 = vadd.f32 %v506, %v508
    %510 = vst [vmem:[#allocation2 + $0x1] sm:$0x10] %v509
    %s511 = sld [smem:[#allocation3 + $0x18]]
    %v512 = vstv %s511
    %v513 = vmul.f32 %v512, %v37
    %s514 = sld [smem:[#allocation3 + $0x1b]]
    %v515 = vstv %s514
    %v516 = vmul.f32 %v515, %v37
    %v518 = vrot.slane %v516, 1
    %v520 = vadd.f32 %v513, %v518
    %s521 = sld [smem:[#allocation3 + $0x1e]]
    %v522 = vstv %s521
    %v523 = vmul.f32 %v522, %v37
    %v525 = vrot.slane %v523, 2
    %v527 = vadd.f32 %v520, %v525
    %s528 = sld [smem:[#allocation3 + $0x21]]
    %v529 = vstv %s528
    %v530 = vmul.f32 %v529, %v37
    %v532 = vrot.slane %v530, 3
    %v534 = vadd.f32 %v527, %v532
    %s535 = sld [smem:[#allocation3 + $0x19]]
    %v536 = vstv %s535
    %v537 = vmul.f32 %v536, %v32
    %v538 = vadd.f32 %v534, %v537
    %s539 = sld [smem:[#allocation3 + $0x1c]]
    %v540 = vstv %s539
    %v541 = vmul.f32 %v540, %v32
    %v543 = vrot.slane %v541, 1
    %v545 = vadd.f32 %v538, %v543
    %s546 = sld [smem:[#allocation3 + $0x1f]]
    %v547 = vstv %s546
    %v548 = vmul.f32 %v547, %v32
    %v550 = vrot.slane %v548, 2
    %v552 = vadd.f32 %v545, %v550
    %s553 = sld [smem:[#allocation3 + $0x22]]
    %v554 = vstv %s553
    %v555 = vmul.f32 %v554, %v32
    %v557 = vrot.slane %v555, 3
    %v559 = vadd.f32 %v552, %v557
    %s560 = sld [smem:[#allocation3 + $0x1a]]
    %v561 = vstv %s560
    %v562 = vmul.f32 %v561, %v42
    %v563 = vadd.f32 %v559, %v562
    %s564 = sld [smem:[#allocation3 + $0x1d]]
    %v565 = vstv %s564
    %v566 = vmul.f32 %v565, %v42
    %v568 = vrot.slane %v566, 1
    %v570 = vadd.f32 %v563, %v568
    %s571 = sld [smem:[#allocation3 + $0x20]]
    %v572 = vstv %s571
    %v573 = vmul.f32 %v572, %v42
    %v575 = vrot.slane %v573, 2
    %v577 = vadd.f32 %v570, %v575
    %s578 = sld [smem:[#allocation3 + $0x23]]
    %v579 = vstv %s578
    %v580 = vmul.f32 %v579, %v42
    %v582 = vrot.slane %v580, 3
    %v584 = vadd.f32 %v577, %v582
    %s585 = sld [smem:[#allocation3 + $0x92]]
    %v586 = vstv %s585
    %v587 = vadd.f32 %v584, %v586
    %588 = vst [vmem:[#allocation2 + $0x2] sm:$0x10] %v587
    %s589 = sld [smem:[#allocation3 + $0x24]]
    %v590 = vstv %s589
    %v591 = vmul.f32 %v590, %v37
    %s592 = sld [smem:[#allocation3 + $0x27]]
    %v593 = vstv %s592
    %v594 = vmul.f32 %v593, %v37
    %v596 = vrot.slane %v594, 1
    %v598 = vadd.f32 %v591, %v596
    %s599 = sld [smem:[#allocation3 + $0x2a]]
    %v600 = vstv %s599
    %v601 = vmul.f32 %v600, %v37
    %v603 = vrot.slane %v601, 2
    %v605 = vadd.f32 %v598, %v603
    %s606 = sld [smem:[#allocation3 + $0x2d]]
    %v607 = vstv %s606
    %v608 = vmul.f32 %v607, %v37
    %v610 = vrot.slane %v608, 3
    %v612 = vadd.f32 %v605, %v610
    %s613 = sld [smem:[#allocation3 + $0x25]]
    %v614 = vstv %s613
    %v615 = vmul.f32 %v614, %v32
    %v616 = vadd.f32 %v612, %v615
    %s617 = sld [smem:[#allocation3 + $0x28]]
    %v618 = vstv %s617
    %v619 = vmul.f32 %v618, %v32
    %v621 = vrot.slane %v619, 1
    %v623 = vadd.f32 %v616, %v621
    %s624 = sld [smem:[#allocation3 + $0x2b]]
    %v625 = vstv %s624
    %v626 = vmul.f32 %v625, %v32
    %v628 = vrot.slane %v626, 2
    %v630 = vadd.f32 %v623, %v628
    %s631 = sld [smem:[#allocation3 + $0x2e]]
    %v632 = vstv %s631
    %v633 = vmul.f32 %v632, %v32
    %v635 = vrot.slane %v633, 3
    %v637 = vadd.f32 %v630, %v635
    %s638 = sld [smem:[#allocation3 + $0x26]]
    %v639 = vstv %s638
    %v640 = vmul.f32 %v639, %v42
    %v641 = vadd.f32 %v637, %v640
    %s642 = sld [smem:[#allocation3 + $0x29]]
    %v643 = vstv %s642
    %v644 = vmul.f32 %v643, %v42
    %v646 = vrot.slane %v644, 1
    %v648 = vadd.f32 %v641, %v646
    %s649 = sld [smem:[#allocation3 + $0x2c]]
    %v650 = vstv %s649
    %v651 = vmul.f32 %v650, %v42
    %v653 = vrot.slane %v651, 2
    %v655 = vadd.f32 %v648, %v653
    %s656 = sld [smem:[#allocation3 + $0x2f]]
    %v657 = vstv %s656
    %v658 = vmul.f32 %v657, %v42
    %v660 = vrot.slane %v658, 3
    %v662 = vadd.f32 %v655, %v660
    %s663 = sld [smem:[#allocation3 + $0x93]]
    %v664 = vstv %s663
    %v665 = vadd.f32 %v662, %v664
    %666 = vst [vmem:[#allocation2 + $0x3] sm:$0x10] %v665
    %v667 = vld [vmem:[#allocation2] sm:$0xff]
    %v668 = vmax.f32 %v667, 0.0
    %v669 = vld [vmem:[%s1] sm:$0xff]
    %s670 = scalar_lea.vmem %s1, 8
    %v671 = vld [vmem:[%s670] sm:$0xff]
    %672 = vadd.xlane.f32.xlu0 %v668
    %v673 = vpop.xlane.xlu0 %672
    %v674 = vmul.f32 %v668, %v668
    %675 = vadd.xlane.f32.xlu0 %v674
    %v676 = vpop.xlane.xlu0 %675
    %v677 = vrot.slane %v673, 4
    %v678 = vadd.f32 %v673, %v677
    %v679 = vmul.f32 %v678, 0.00390625
    %v680 = vrot.slane %v676, 4
    %v681 = vadd.f32 %v676, %v680
    %v682 = vmul.f32 %v681, 0.00390625
    %v683 = vmul.f32 %v679, %v679
    %v684 = vsub.f32 %v682, %v683
    %v685 = vmax.f32 %v684, 0.0
    %v686 = vadd.f32 %v685, 1e-05
    %v687 = vrsqrt.pop %v686
    %v688 = vmul.f32 %v669, %v687
    %v689 = vmul.f32 %v679, %v688
    %v690 = vsub.f32 %v671, %v689
    %692 = vset.pattern.permute.xlu0 0
    %693 = vperm.xlu0 %692, %v688
    %v694 = vpop.permute.xlu0 %693
    %v696 = vmul.f32 %v668, %v694
    %698 = vset.pattern.permute.xlu0 0
    %699 = vperm.xlu0 %698, %v690
    %v700 = vpop.permute.xlu0 %699
    %v702 = vadd.f32 %v696, %v700
    %703 = vrot.lane.b32.xlu0 %v702, 1
    %v704 = vpop.permute.xlu0 %703
    %v705 = vsel %vm36, %v704, 0.0
    %706 = vrot.lane.b32.xlu0 %v702, 127
    %v707 = vpop.permute.xlu0 %706
    %v708 = vsel %vm41, %v707, 0.0
    %s709 = sld [smem:[#allocation3 + $0x30]]
    %v710 = vstv %s709
    %v711 = vmul.f32 %v710, %v705
    %s712 = sld [smem:[#allocation3 + $0x33]]
    %v713 = vstv %s712
    %v714 = vmul.f32 %v713, %v705
    %v716 = vrot.slane %v714, 1
    %v718 = vadd.f32 %v711, %v716
    %s719 = sld [smem:[#allocation3 + $0x36]]
    %v720 = vstv %s719
    %v721 = vmul.f32 %v720, %v705
    %v723 = vrot.slane %v721, 2
    %v725 = vadd.f32 %v718, %v723
    %s726 = sld [smem:[#allocation3 + $0x39]]
    %v727 = vstv %s726
    %v728 = vmul.f32 %v727, %v705
    %v730 = vrot.slane %v728, 3
    %v732 = vadd.f32 %v725, %v730
    %s733 = sld [smem:[#allocation3 + $0x31]]
    %v734 = vstv %s733
    %v735 = vmul.f32 %v734, %v702
    %v736 = vadd.f32 %v732, %v735
    %s737 = sld [smem:[#allocation3 + $0x34]]
    %v738 = vstv %s737
    %v739 = vmul.f32 %v738, %v702
    %v741 = vrot.slane %v739, 1
    %v743 = vadd.f32 %v736, %v741
    %s744 = sld [smem:[#allocation3 + $0x37]]
    %v745 = vstv %s744
    %v746 = vmul.f32 %v745, %v702
    %v748 = vrot.slane %v746, 2
    %v750 = vadd.f32 %v743, %v748
    %s751 = sld [smem:[#allocation3 + $0x3a]]
    %v752 = vstv %s751
    %v753 = vmul.f32 %v752, %v702
    %v755 = vrot.slane %v753, 3
    %v757 = vadd.f32 %v750, %v755
    %s758 = sld [smem:[#allocation3 + $0x32]]
    %v759 = vstv %s758
    %v760 = vmul.f32 %v759, %v708
    %v761 = vadd.f32 %v757, %v760
    %s762 = sld [smem:[#allocation3 + $0x35]]
    %v763 = vstv %s762
    %v764 = vmul.f32 %v763, %v708
    %v766 = vrot.slane %v764, 1
    %v768 = vadd.f32 %v761, %v766
    %s769 = sld [smem:[#allocation3 + $0x38]]
    %v770 = vstv %s769
    %v771 = vmul.f32 %v770, %v708
    %v773 = vrot.slane %v771, 2
    %v775 = vadd.f32 %v768, %v773
    %s776 = sld [smem:[#allocation3 + $0x3b]]
    %v777 = vstv %s776
    %v778 = vmul.f32 %v777, %v708
    %v780 = vrot.slane %v778, 3
    %v782 = vadd.f32 %v775, %v780
    %783 = vst [vmem:[#allocation2] sm:$0x1] %v782
    %s784 = sld [smem:[#allocation3 + $0x3c]]
    %v785 = vstv %s784
    %v786 = vmul.f32 %v785, %v705
    %s787 = sld [smem:[#allocation3 + $0x3f]]
    %v788 = vstv %s787
    %v789 = vmul.f32 %v788, %v705
    %v791 = vrot.slane %v789, 1
    %v793 = vadd.f32 %v786, %v791
    %s794 = sld [smem:[#allocation3 + $0x42]]
    %v795 = vstv %s794
    %v796 = vmul.f32 %v795, %v705
    %v798 = vrot.slane %v796, 2
    %v800 = vadd.f32 %v793, %v798
    %s801 = sld [smem:[#allocation3 + $0x45]]
    %v802 = vstv %s801
    %v803 = vmul.f32 %v802, %v705
    %v805 = vrot.slane %v803, 3
    %v807 = vadd.f32 %v800, %v805
    %s808 = sld [smem:[#allocation3 + $0x3d]]
    %v809 = vstv %s808
    %v810 = vmul.f32 %v809, %v702
    %v811 = vadd.f32 %v807, %v810
    %s812 = sld [smem:[#allocation3 + $0x40]]
    %v813 = vstv %s812
    %v814 = vmul.f32 %v813, %v702
    %v816 = vrot.slane %v814, 1
    %v818 = vadd.f32 %v811, %v816
    %s819 = sld [smem:[#allocation3 + $0x43]]
    %v820 = vstv %s819
    %v821 = vmul.f32 %v820, %v702
    %v823 = vrot.slane %v821, 2
    %v825 = vadd.f32 %v818, %v823
    %s826 = sld [smem:[#allocation3 + $0x46]]
    %v827 = vstv %s826
    %v828 = vmul.f32 %v827, %v702
    %v830 = vrot.slane %v828, 3
    %v832 = vadd.f32 %v825, %v830
    %s833 = sld [smem:[#allocation3 + $0x3e]]
    %v834 = vstv %s833
    %v835 = vmul.f32 %v834, %v708
    %v836 = vadd.f32 %v832, %v835
    %s837 = sld [smem:[#allocation3 + $0x41]]
    %v838 = vstv %s837
    %v839 = vmul.f32 %v838, %v708
    %v841 = vrot.slane %v839, 1
    %v843 = vadd.f32 %v836, %v841
    %s844 = sld [smem:[#allocation3 + $0x44]]
    %v845 = vstv %s844
    %v846 = vmul.f32 %v845, %v708
    %v848 = vrot.slane %v846, 2
    %v850 = vadd.f32 %v843, %v848
    %s851 = sld [smem:[#allocation3 + $0x47]]
    %v852 = vstv %s851
    %v853 = vmul.f32 %v852, %v708
    %v855 = vrot.slane %v853, 3
    %v857 = vadd.f32 %v850, %v855
    %858 = vst [vmem:[#allocation2 + $0x1] sm:$0x1] %v857
    %s859 = sld [smem:[#allocation3 + $0x48]]
    %v860 = vstv %s859
    %v861 = vmul.f32 %v860, %v705
    %s862 = sld [smem:[#allocation3 + $0x4b]]
    %v863 = vstv %s862
    %v864 = vmul.f32 %v863, %v705
    %v866 = vrot.slane %v864, 1
    %v868 = vadd.f32 %v861, %v866
    %s869 = sld [smem:[#allocation3 + $0x4e]]
    %v870 = vstv %s869
    %v871 = vmul.f32 %v870, %v705
    %v873 = vrot.slane %v871, 2
    %v875 = vadd.f32 %v868, %v873
    %s876 = sld [smem:[#allocation3 + $0x51]]
    %v877 = vstv %s876
    %v878 = vmul.f32 %v877, %v705
    %v880 = vrot.slane %v878, 3
    %v882 = vadd.f32 %v875, %v880
    %s883 = sld [smem:[#allocation3 + $0x49]]
    %v884 = vstv %s883
    %v885 = vmul.f32 %v884, %v702
    %v886 = vadd.f32 %v882, %v885
    %s887 = sld [smem:[#allocation3 + $0x4c]]
    %v888 = vstv %s887
    %v889 = vmul.f32 %v888, %v702
    %v891 = vrot.slane %v889, 1
    %v893 = vadd.f32 %v886, %v891
    %s894 = sld [smem:[#allocation3 + $0x4f]]
    %v895 = vstv %s894
    %v896 = vmul.f32 %v895, %v702
    %v898 = vrot.slane %v896, 2
    %v900 = vadd.f32 %v893, %v898
    %s901 = sld [smem:[#allocation3 + $0x52]]
    %v902 = vstv %s901
    %v903 = vmul.f32 %v902, %v702
    %v905 = vrot.slane %v903, 3
    %v907 = vadd.f32 %v900, %v905
    %s908 = sld [smem:[#allocation3 + $0x4a]]
    %v909 = vstv %s908
    %v910 = vmul.f32 %v909, %v708
    %v911 = vadd.f32 %v907, %v910
    %s912 = sld [smem:[#allocation3 + $0x4d]]
    %v913 = vstv %s912
    %v914 = vmul.f32 %v913, %v708
    %v916 = vrot.slane %v914, 1
    %v918 = vadd.f32 %v911, %v916
    %s919 = sld [smem:[#allocation3 + $0x50]]
    %v920 = vstv %s919
    %v921 = vmul.f32 %v920, %v708
    %v923 = vrot.slane %v921, 2
    %v925 = vadd.f32 %v918, %v923
    %s926 = sld [smem:[#allocation3 + $0x53]]
    %v927 = vstv %s926
    %v928 = vmul.f32 %v927, %v708
    %v930 = vrot.slane %v928, 3
    %v932 = vadd.f32 %v925, %v930
    %933 = vst [vmem:[#allocation2 + $0x2] sm:$0x1] %v932
    %s934 = sld [smem:[#allocation3 + $0x54]]
    %v935 = vstv %s934
    %v936 = vmul.f32 %v935, %v705
    %s937 = sld [smem:[#allocation3 + $0x57]]
    %v938 = vstv %s937
    %v939 = vmul.f32 %v938, %v705
    %v941 = vrot.slane %v939, 1
    %v943 = vadd.f32 %v936, %v941
    %s944 = sld [smem:[#allocation3 + $0x5a]]
    %v945 = vstv %s944
    %v946 = vmul.f32 %v945, %v705
    %v948 = vrot.slane %v946, 2
    %v950 = vadd.f32 %v943, %v948
    %s951 = sld [smem:[#allocation3 + $0x5d]]
    %v952 = vstv %s951
    %v953 = vmul.f32 %v952, %v705
    %v955 = vrot.slane %v953, 3
    %v957 = vadd.f32 %v950, %v955
    %s958 = sld [smem:[#allocation3 + $0x55]]
    %v959 = vstv %s958
    %v960 = vmul.f32 %v959, %v702
    %v961 = vadd.f32 %v957, %v960
    %s962 = sld [smem:[#allocation3 + $0x58]]
    %v963 = vstv %s962
    %v964 = vmul.f32 %v963, %v702
    %v966 = vrot.slane %v964, 1
    %v968 = vadd.f32 %v961, %v966
    %s969 = sld [smem:[#allocation3 + $0x5b]]
    %v970 = vstv %s969
    %v971 = vmul.f32 %v970, %v702
    %v973 = vrot.slane %v971, 2
    %v975 = vadd.f32 %v968, %v973
    %s976 = sld [smem:[#allocation3 + $0x5e]]
    %v977 = vstv %s976
    %v978 = vmul.f32 %v977, %v702
    %v980 = vrot.slane %v978, 3
    %v982 = vadd.f32 %v975, %v980
    %s983 = sld [smem:[#allocation3 + $0x56]]
    %v984 = vstv %s983
    %v985 = vmul.f32 %v984, %v708
    %v986 = vadd.f32 %v982, %v985
    %s987 = sld [smem:[#allocation3 + $0x59]]
    %v988 = vstv %s987
    %v989 = vmul.f32 %v988, %v708
    %v991 = vrot.slane %v989, 1
    %v993 = vadd.f32 %v986, %v991
    %s994 = sld [smem:[#allocation3 + $0x5c]]
    %v995 = vstv %s994
    %v996 = vmul.f32 %v995, %v708
    %v998 = vrot.slane %v996, 2
    %v1000 = vadd.f32 %v993, %v998
    %s1001 = sld [smem:[#allocation3 + $0x5f]]
    %v1002 = vstv %s1001
    %v1003 = vmul.f32 %v1002, %v708
    %v1005 = vrot.slane %v1003, 3
    %v1007 = vadd.f32 %v1000, %v1005
    %1008 = vst [vmem:[#allocation2 + $0x3] sm:$0x1] %v1007
    %s1009 = sld [smem:[#allocation3 + $0x30]]
    %v1010 = vstv %s1009
    %v1011 = vmul.f32 %v1010, %v705
    %s1012 = sld [smem:[#allocation3 + $0x33]]
    %v1013 = vstv %s1012
    %v1014 = vmul.f32 %v1013, %v705
    %v1016 = vrot.slane %v1014, 1
    %v1018 = vadd.f32 %v1011, %v1016
    %s1019 = sld [smem:[#allocation3 + $0x36]]
    %v1020 = vstv %s1019
    %v1021 = vmul.f32 %v1020, %v705
    %v1023 = vrot.slane %v1021, 2
    %v1025 = vadd.f32 %v1018, %v1023
    %s1026 = sld [smem:[#allocation3 + $0x39]]
    %v1027 = vstv %s1026
    %v1028 = vmul.f32 %v1027, %v705
    %v1030 = vrot.slane %v1028, 3
    %v1032 = vadd.f32 %v1025, %v1030
    %s1033 = sld [smem:[#allocation3 + $0x31]]
    %v1034 = vstv %s1033
    %v1035 = vmul.f32 %v1034, %v702
    %v1036 = vadd.f32 %v1032, %v1035
    %s1037 = sld [smem:[#allocation3 + $0x34]]
    %v1038 = vstv %s1037
    %v1039 = vmul.f32 %v1038, %v702
    %v1041 = vrot.slane %v1039, 1
    %v1043 = vadd.f32 %v1036, %v1041
    %s1044 = sld [smem:[#allocation3 + $0x37]]
    %v1045 = vstv %s1044
    %v1046 = vmul.f32 %v1045, %v702
    %v1048 = vrot.slane %v1046, 2
    %v1050 = vadd.f32 %v1043, %v1048
    %s1051 = sld [smem:[#allocation3 + $0x3a]]
    %v1052 = vstv %s1051
    %v1053 = vmul.f32 %v1052, %v702
    %v1055 = vrot.slane %v1053, 3
    %v1057 = vadd.f32 %v1050, %v1055
    %s1058 = sld [smem:[#allocation3 + $0x32]]
    %v1059 = vstv %s1058
    %v1060 = vmul.f32 %v1059, %v708
    %v1061 = vadd.f32 %v1057, %v1060
    %s1062 = sld [smem:[#allocation3 + $0x35]]
    %v1063 = vstv %s1062
    %v1064 = vmul.f32 %v1063, %v708
    %v1066 = vrot.slane %v1064, 1
    %v1068 = vadd.f32 %v1061, %v1066
    %s1069 = sld [smem:[#allocation3 + $0x38]]
    %v1070 = vstv %s1069
    %v1071 = vmul.f32 %v1070, %v708
    %v1073 = vrot.slane %v1071, 2
    %v1075 = vadd.f32 %v1068, %v1073
    %s1076 = sld [smem:[#allocation3 + $0x3b]]
    %v1077 = vstv %s1076
    %v1078 = vmul.f32 %v1077, %v708
    %v1080 = vrot.slane %v1078, 3
    %v1082 = vadd.f32 %v1075, %v1080
    %1083 = vst [vmem:[#allocation2] sm:$0x10] %v1082
    %s1084 = sld [smem:[#allocation3 + $0x3c]]
    %v1085 = vstv %s1084
    %v1086 = vmul.f32 %v1085, %v705
    %s1087 = sld [smem:[#allocation3 + $0x3f]]
    %v1088 = vstv %s1087
    %v1089 = vmul.f32 %v1088, %v705
    %v1091 = vrot.slane %v1089, 1
    %v1093 = vadd.f32 %v1086, %v1091
    %s1094 = sld [smem:[#allocation3 + $0x42]]
    %v1095 = vstv %s1094
    %v1096 = vmul.f32 %v1095, %v705
    %v1098 = vrot.slane %v1096, 2
    %v1100 = vadd.f32 %v1093, %v1098
    %s1101 = sld [smem:[#allocation3 + $0x45]]
    %v1102 = vstv %s1101
    %v1103 = vmul.f32 %v1102, %v705
    %v1105 = vrot.slane %v1103, 3
    %v1107 = vadd.f32 %v1100, %v1105
    %s1108 = sld [smem:[#allocation3 + $0x3d]]
    %v1109 = vstv %s1108
    %v1110 = vmul.f32 %v1109, %v702
    %v1111 = vadd.f32 %v1107, %v1110
    %s1112 = sld [smem:[#allocation3 + $0x40]]
    %v1113 = vstv %s1112
    %v1114 = vmul.f32 %v1113, %v702
    %v1116 = vrot.slane %v1114, 1
    %v1118 = vadd.f32 %v1111, %v1116
    %s1119 = sld [smem:[#allocation3 + $0x43]]
    %v1120 = vstv %s1119
    %v1121 = vmul.f32 %v1120, %v702
    %v1123 = vrot.slane %v1121, 2
    %v1125 = vadd.f32 %v1118, %v1123
    %s1126 = sld [smem:[#allocation3 + $0x46]]
    %v1127 = vstv %s1126
    %v1128 = vmul.f32 %v1127, %v702
    %v1130 = vrot.slane %v1128, 3
    %v1132 = vadd.f32 %v1125, %v1130
    %s1133 = sld [smem:[#allocation3 + $0x3e]]
    %v1134 = vstv %s1133
    %v1135 = vmul.f32 %v1134, %v708
    %v1136 = vadd.f32 %v1132, %v1135
    %s1137 = sld [smem:[#allocation3 + $0x41]]
    %v1138 = vstv %s1137
    %v1139 = vmul.f32 %v1138, %v708
    %v1141 = vrot.slane %v1139, 1
    %v1143 = vadd.f32 %v1136, %v1141
    %s1144 = sld [smem:[#allocation3 + $0x44]]
    %v1145 = vstv %s1144
    %v1146 = vmul.f32 %v1145, %v708
    %v1148 = vrot.slane %v1146, 2
    %v1150 = vadd.f32 %v1143, %v1148
    %s1151 = sld [smem:[#allocation3 + $0x47]]
    %v1152 = vstv %s1151
    %v1153 = vmul.f32 %v1152, %v708
    %v1155 = vrot.slane %v1153, 3
    %v1157 = vadd.f32 %v1150, %v1155
    %1158 = vst [vmem:[#allocation2 + $0x1] sm:$0x10] %v1157
    %s1159 = sld [smem:[#allocation3 + $0x48]]
    %v1160 = vstv %s1159
    %v1161 = vmul.f32 %v1160, %v705
    %s1162 = sld [smem:[#allocation3 + $0x4b]]
    %v1163 = vstv %s1162
    %v1164 = vmul.f32 %v1163, %v705
    %v1166 = vrot.slane %v1164, 1
    %v1168 = vadd.f32 %v1161, %v1166
    %s1169 = sld [smem:[#allocation3 + $0x4e]]
    %v1170 = vstv %s1169
    %v1171 = vmul.f32 %v1170, %v705
    %v1173 = vrot.slane %v1171, 2
    %v1175 = vadd.f32 %v1168, %v1173
    %s1176 = sld [smem:[#allocation3 + $0x51]]
    %v1177 = vstv %s1176
    %v1178 = vmul.f32 %v1177, %v705
    %v1180 = vrot.slane %v1178, 3
    %v1182 = vadd.f32 %v1175, %v1180
    %s1183 = sld [smem:[#allocation3 + $0x49]]
    %v1184 = vstv %s1183
    %v1185 = vmul.f32 %v1184, %v702
    %v1186 = vadd.f32 %v1182, %v1185
    %s1187 = sld [smem:[#allocation3 + $0x4c]]
    %v1188 = vstv %s1187
    %v1189 = vmul.f32 %v1188, %v702
    %v1191 = vrot.slane %v1189, 1
    %v1193 = vadd.f32 %v1186, %v1191
    %s1194 = sld [smem:[#allocation3 + $0x4f]]
    %v1195 = vstv %s1194
    %v1196 = vmul.f32 %v1195, %v702
    %v1198 = vrot.slane %v1196, 2
    %v1200 = vadd.f32 %v1193, %v1198
    %s1201 = sld [smem:[#allocation3 + $0x52]]
    %v1202 = vstv %s1201
    %v1203 = vmul.f32 %v1202, %v702
    %v1205 = vrot.slane %v1203, 3
    %v1207 = vadd.f32 %v1200, %v1205
    %s1208 = sld [smem:[#allocation3 + $0x4a]]
    %v1209 = vstv %s1208
    %v1210 = vmul.f32 %v1209, %v708
    %v1211 = vadd.f32 %v1207, %v1210
    %s1212 = sld [smem:[#allocation3 + $0x4d]]
    %v1213 = vstv %s1212
    %v1214 = vmul.f32 %v1213, %v708
    %v1216 = vrot.slane %v1214, 1
    %v1218 = vadd.f32 %v1211, %v1216
    %s1219 = sld [smem:[#allocation3 + $0x50]]
    %v1220 = vstv %s1219
    %v1221 = vmul.f32 %v1220, %v708
    %v1223 = vrot.slane %v1221, 2
    %v1225 = vadd.f32 %v1218, %v1223
    %s1226 = sld [smem:[#allocation3 + $0x53]]
    %v1227 = vstv %s1226
    %v1228 = vmul.f32 %v1227, %v708
    %v1230 = vrot.slane %v1228, 3
    %v1232 = vadd.f32 %v1225, %v1230
    %1233 = vst [vmem:[#allocation2 + $0x2] sm:$0x10] %v1232
    %s1234 = sld [smem:[#allocation3 + $0x54]]
    %v1235 = vstv %s1234
    %v1236 = vmul.f32 %v1235, %v705
    %s1237 = sld [smem:[#allocation3 + $0x57]]
    %v1238 = vstv %s1237
    %v1239 = vmul.f32 %v1238, %v705
    %v1241 = vrot.slane %v1239, 1
    %v1243 = vadd.f32 %v1236, %v1241
    %s1244 = sld [smem:[#allocation3 + $0x5a]]
    %v1245 = vstv %s1244
    %v1246 = vmul.f32 %v1245, %v705
    %v1248 = vrot.slane %v1246, 2
    %v1250 = vadd.f32 %v1243, %v1248
    %s1251 = sld [smem:[#allocation3 + $0x5d]]
    %v1252 = vstv %s1251
    %v1253 = vmul.f32 %v1252, %v705
    %v1255 = vrot.slane %v1253, 3
    %v1257 = vadd.f32 %v1250, %v1255
    %s1258 = sld [smem:[#allocation3 + $0x55]]
    %v1259 = vstv %s1258
    %v1260 = vmul.f32 %v1259, %v702
    %v1261 = vadd.f32 %v1257, %v1260
    %s1262 = sld [smem:[#allocation3 + $0x58]]
    %v1263 = vstv %s1262
    %v1264 = vmul.f32 %v1263, %v702
    %v1266 = vrot.slane %v1264, 1
    %v1268 = vadd.f32 %v1261, %v1266
    %s1269 = sld [smem:[#allocation3 + $0x5b]]
    %v1270 = vstv %s1269
    %v1271 = vmul.f32 %v1270, %v702
    %v1273 = vrot.slane %v1271, 2
    %v1275 = vadd.f32 %v1268, %v1273
    %s1276 = sld [smem:[#allocation3 + $0x5e]]
    %v1277 = vstv %s1276
    %v1278 = vmul.f32 %v1277, %v702
    %v1280 = vrot.slane %v1278, 3
    %v1282 = vadd.f32 %v1275, %v1280
    %s1283 = sld [smem:[#allocation3 + $0x56]]
    %v1284 = vstv %s1283
    %v1285 = vmul.f32 %v1284, %v708
    %v1286 = vadd.f32 %v1282, %v1285
    %s1287 = sld [smem:[#allocation3 + $0x59]]
    %v1288 = vstv %s1287
    %v1289 = vmul.f32 %v1288, %v708
    %v1291 = vrot.slane %v1289, 1
    %v1293 = vadd.f32 %v1286, %v1291
    %s1294 = sld [smem:[#allocation3 + $0x5c]]
    %v1295 = vstv %s1294
    %v1296 = vmul.f32 %v1295, %v708
    %v1298 = vrot.slane %v1296, 2
    %v1300 = vadd.f32 %v1293, %v1298
    %s1301 = sld [smem:[#allocation3 + $0x5f]]
    %v1302 = vstv %s1301
    %v1303 = vmul.f32 %v1302, %v708
    %v1305 = vrot.slane %v1303, 3
    %v1307 = vadd.f32 %v1300, %v1305
    %1308 = vst [vmem:[#allocation2 + $0x3] sm:$0x10] %v1307
    %v1309 = vld [vmem:[#allocation2] sm:$0xff]
    %s1310 = scalar_lea.vmem %s1, 16
    %v1311 = vld [vmem:[%s1310] sm:$0xff]
    %s1312 = scalar_lea.vmem %s1, 24
    %v1313 = vld [vmem:[%s1312] sm:$0xff]
    %1314 = vadd.xlane.f32.xlu0 %v1309
    %v1315 = vpop.xlane.xlu0 %1314
    %v1316 = vmul.f32 %v1309, %v1309
    %1317 = vadd.xlane.f32.xlu0 %v1316
    %v1318 = vpop.xlane.xlu0 %1317
    %v1319 = vrot.slane %v1315, 4
    %v1320 = vadd.f32 %v1315, %v1319
    %v1321 = vmul.f32 %v1320, 0.00390625
    %v1322 = vrot.slane %v1318, 4
    %v1323 = vadd.f32 %v1318, %v1322
    %v1324 = vmul.f32 %v1323, 0.00390625
    %v1325 = vmul.f32 %v1321, %v1321
    %v1326 = vsub.f32 %v1324, %v1325
    %v1327 = vmax.f32 %v1326, 0.0
    %v1328 = vadd.f32 %v1327, 1e-05
    %v1329 = vrsqrt.pop %v1328
    %v1330 = vmul.f32 %v1311, %v1329
    %v1331 = vmul.f32 %v1321, %v1330
    %v1332 = vsub.f32 %v1313, %v1331
    %1334 = vset.pattern.permute.xlu0 0
    %1335 = vperm.xlu0 %1334, %v1330
    %v1336 = vpop.permute.xlu0 %1335
    %v1338 = vmul.f32 %v1309, %v1336
    %1340 = vset.pattern.permute.xlu0 0
    %1341 = vperm.xlu0 %1340, %v1332
    %v1342 = vpop.permute.xlu0 %1341
    %v1344 = vadd.f32 %v1338, %v1342
    %v1345 = vadd.f32 %v32, %v1344
    %1346 = vst [vmem:[#allocation6] sm:$0xff] %v1345
    // Predicated region
    $region18: #{tpu_custom_call.1} parent=1 // pred_check
      _
    $region19: #{tpu_custom_call.1} parent=1 // pred_check_branch
      %1348 = sbr.rel (0) target = $region21
    $region20: #{tpu_custom_call.1} parent=1 // pred_region
      %s1350 = ssub.s32 128, 128
      %1351 = vsyncadd [#allocation4], %s1350
      %s1353 = sshll.u32 [#allocation6], 4
      %s1354 = int_to_ptr.vmem [resolvable:$true] %s1353
      %1356 = dma.vmem_to_hbm [thread:$0]  %s1354, 128, %s3, [#allocation4]
    $region21: #{tpu_custom_call.1} parent=1 // pred_fallthru
      _
    // Predicated region
    $region22: #{tpu_custom_call.1} parent=1 // pred_check
      _
    $region23: #{tpu_custom_call.1} parent=1 // pred_check_branch
      %1358 = sbr.rel (0) target = $region25
    $region24: #{tpu_custom_call.1} parent=1 // pred_region
      %1359 = dma.done [#allocation4], 128
    $region25: #{tpu_custom_call.1} parent=1 // pred_fallthru
      _
    %1360 = vsyncpa [#allocation4], 1
    %1361 = vsyncpa [#allocation5], 1

</llo_original>
